<compile_context>
chip_gen: v6e
topology: v6e:2x2x1
jax: 0.10.0
libtpu: 0.0.40
codegen_flags: <defaults>
</compile_context>

<pallas_src>
import math

import jax
import jax.numpy as jnp
from jax.experimental import pallas as pl
from jax.experimental.pallas import tpu as pltpu


# ----------------------------------------------------------------------------
# Fused Pallas kernel: cls branch + kpt branch + points2bbox (minmax)
# ----------------------------------------------------------------------------
def _kpdet_fused_kernel(cls_p_ref, pts_p_ref,
                        w1c_ref, b1c_ref, w2c_ref, b2c_ref,
                        w1k_ref, b1k_ref, w2k_ref, b2k_ref,
                        cls_ref, kpt_ref, bbox_ref):
    f32 = jnp.float32
    bf16 = jnp.bfloat16

    # ---- cls branch: conv3x3 (matmul over im2col) + bias + ReLU + conv1x1 ----
    # (F, 9Cin) @ (9Cin, THW) -> (F, THW), lane-dense along THW
    hc = jnp.dot(w1c_ref[...], cls_p_ref[0], preferred_element_type=f32)
    hc = jnp.maximum(hc + b1c_ref[...], 0.0)
    cls = jnp.dot(w2c_ref[...], hc.astype(bf16), preferred_element_type=f32)
    cls_ref[0] = (cls + b2c_ref[...]).astype(cls_ref.dtype)

    # ---- keypoint branch ----
    hk = jnp.dot(w1k_ref[...], pts_p_ref[0], preferred_element_type=f32)
    hk = jnp.maximum(hk + b1k_ref[...], 0.0)
    kpt = jnp.dot(w2k_ref[...], hk.astype(bf16), preferred_element_type=f32)
    kpt = kpt + b2k_ref[...]                       # (2K, THW), f32
    kpt_ref[0] = kpt.astype(kpt_ref.dtype)

    # ---- points2bbox (minmax), y_first=True: rows 0,2,.. = y, rows 1,3,.. = x
    # Channel-axis reduction while kpt is still in VMEM; (4, THW) lane-dense out.
    K = kpt.shape[0] // 2
    py_min = kpt[0:1]
    py_max = kpt[0:1]
    px_min = kpt[1:2]
    px_max = kpt[1:2]
    for i in range(1, K):                          # small static unroll (K=17)
        y = kpt[2 * i:2 * i + 1]
        x = kpt[2 * i + 1:2 * i + 2]
        py_min = jnp.minimum(py_min, y)
        py_max = jnp.maximum(py_max, y)
        px_min = jnp.minimum(px_min, x)
        px_max = jnp.maximum(px_max, x)
    bbox = jnp.concatenate([px_min, py_min, px_max, py_max], axis=0)
    bbox_ref[0] = bbox.astype(bbox_ref.dtype)


# ----------------------------------------------------------------------------
# pallas_call wrapper
# ----------------------------------------------------------------------------
def kpdet_fused_call(cls_p, pts_p, w1c, b1c, w2c, b2c, w1k, b1k, w2k, b2k):
    """cls_p/pts_p: (B, 9*Cin, HW) bf16; weights bf16, biases f32 (C, 1)."""
    B, KIN, HW = cls_p.shape
    CCLS = w2c.shape[0]
    KDIM = w2k.shape[0]

    # Tile HW so large resolutions stay within VMEM (esp. v7x 64 MiB) while
    # small toy sizes use a single full tile.
    thw = 512 if (HW > 512 and HW % 512 == 0) else HW
    nt = HW // thw

    feat_spec = lambda: pl.BlockSpec((1, KIN, thw), lambda b, t: (b, 0, t))
    full_spec = lambda shp: pl.BlockSpec(shp, lambda b, t: (0, 0))
    out_spec = lambda c: pl.BlockSpec((1, c, thw), lambda b, t: (b, 0, t))

    return pl.pallas_call(
        _kpdet_fused_kernel,
        out_shape=(jax.ShapeDtypeStruct((B, CCLS, HW), jnp.float32),
                   jax.ShapeDtypeStruct((B, KDIM, HW), jnp.float32),
                   jax.ShapeDtypeStruct((B, 4, HW), jnp.float32)),
        grid=(B, nt),
        in_specs=[feat_spec(), feat_spec(),
                  full_spec(w1c.shape), full_spec(b1c.shape),
                  full_spec(w2c.shape), full_spec(b2c.shape),
                  full_spec(w1k.shape), full_spec(b1k.shape),
                  full_spec(w2k.shape), full_spec(b2k.shape)],
        out_specs=(out_spec(CCLS), out_spec(KDIM), out_spec(4)),
        compiler_params=pltpu.CompilerParams(
            dimension_semantics=("parallel", "parallel"),
            vmem_limit_bytes=48 * 1024 * 1024),
    )(cls_p, pts_p, w1c, b1c, w2c, b2c, w1k, b1k, w2k, b2k)


# ----------------------------------------------------------------------------
# JAX glue: channels-first im2col, weight re-layout, module forward
# ----------------------------------------------------------------------------
def _im2col3x3_cf(x_nchw):
    """NCHW -> (B, 9*Cin, H*W), tap-major ordering: channel index = tap*Cin + c."""
    B, C, H, W = x_nchw.shape
    xp = jnp.pad(x_nchw, ((0, 0), (0, 0), (1, 1), (1, 1)))
    taps = [xp[:, :, dy:dy + H, dx:dx + W] for dy in range(3) for dx in range(3)]
    p = jnp.concatenate(taps, axis=1)                     # (B, 9C, H, W)
    return p.reshape(B, 9 * C, H * W)


def _w3x3_to_cf(w_oihw):
    """PyTorch (F, Cin, 3, 3) -> (F, 9*Cin) matching _im2col3x3_cf tap ordering."""
    F, C = w_oihw.shape[0], w_oihw.shape[1]
    return jnp.transpose(w_oihw, (0, 2, 3, 1)).reshape(F, 9 * C)


def kpdet_forward(params, cls_feat, pts_feat):
    """KpDetModule.forward, deform_conv=False, transform_method='minmax'.

    cls_feat, pts_feat: NCHW float32.
    Returns (cls_score_map, bbox_offset, kpt_offset), all NCHW float32.
    """
    B, _, H, W = cls_feat.shape

    cls_p = _im2col3x3_cf(cls_feat).astype(jnp.bfloat16)
    pts_p = _im2col3x3_cf(pts_feat).astype(jnp.bfloat16)

    w1c = _w3x3_to_cf(params["cls_conv_w"]).astype(jnp.bfloat16)
    b1c = params["cls_conv_b"].reshape(-1, 1).astype(jnp.float32)
    w2c = params["cls_out_w"][:, :, 0, 0].astype(jnp.bfloat16)
    b2c = params["cls_out_b"].reshape(-1, 1).astype(jnp.float32)

    w1k = _w3x3_to_cf(params["kpt_conv_w"]).astype(jnp.bfloat16)
    b1k = params["kpt_conv_b"].reshape(-1, 1).astype(jnp.float32)
    w2k = params["kpt_out_w"][:, :, 0, 0].astype(jnp.bfloat16)
    b2k = params["kpt_out_b"].reshape(-1, 1).astype(jnp.float32)

    # NOTE: the bbox_param_{conv,out} branch is intentionally not computed: its
    # result is only used as `tranfer_param` of points2bbox, which 'minmax'
    # ignores, and it is not part of the returned tuple (dead code).

    cls, kpt, bbox = kpdet_fused_call(cls_p, pts_p,
                                      w1c, b1c, w2c, b2c,
                                      w1k, b1k, w2k, b2k)

    # (B, C, HW) -> NCHW is a pure reshape (no transpose) with this layout.
    return (cls.reshape(B, cls.shape[1], H, W),
            bbox.reshape(B, 4, H, W),
            kpt.reshape(B, kpt.shape[1], H, W))


# ----------------------------------------------------------------------------
# pure-JAX f32 reference (correctness sanity check)
# ----------------------------------------------------------------------------
def _ref_forward(params, cls_feat, pts_feat):
    dn = ("NCHW", "OIHW", "NCHW")

    def conv(x, w, b, pad):
        y = jax.lax.conv_general_dilated(x, w, (1, 1), ((pad, pad), (pad, pad)),
                                         dimension_numbers=dn)
        return y + b[None, :, None, None]

    cls_score = conv(jnp.maximum(conv(cls_feat, params["cls_conv_w"],
                                      params["cls_conv_b"], 1), 0.0),
                     params["cls_out_w"], params["cls_out_b"], 0)
    kpt = conv(jnp.maximum(conv(pts_feat, params["kpt_conv_w"],
                                params["kpt_conv_b"], 1), 0.0),
               params["kpt_out_w"], params["kpt_out_b"], 0)
    B, C2K, H, W = kpt.shape
    r = kpt.reshape(B, C2K // 2, 2, H, W)
    py, px = r[:, :, 0], r[:, :, 1]
    bbox = jnp.concatenate([px.min(1, keepdims=True), py.min(1, keepdims=True),
                            px.max(1, keepdims=True), py.max(1, keepdims=True)],
                           axis=1)
    return cls_score, bbox, kpt


# ----------------------------------------------------------------------------
# main
# ----------------------------------------------------------------------------
if __name__ == "__main__":
    B, Cin, F, H, W = 2, 32, 32, 16, 16
    cls_out_channels = 8
    num_keypts = 17
    kdim = 2 * num_keypts
    std = 0.01
    bias_cls = float(-math.log((1.0 - 0.01) / 0.01))   # bias_init_with_prob(0.01)

    key = jax.random.PRNGKey(0)
    ks = jax.random.split(key, 8)

    params = {
        # PyTorch-convention weight shapes, normal_init(std=0.01)
        "cls_conv_w": jax.random.normal(ks[0], (F, Cin, 3, 3), jnp.float32) * std,
        "cls_conv_b": jnp.zeros((F,), jnp.float32),
        "cls_out_w": jax.random.normal(ks[1], (cls_out_channels, F, 1, 1), jnp.float32) * std,
        "cls_out_b": jnp.full((cls_out_channels,), bias_cls, jnp.float32),
        "kpt_conv_w": jax.random.normal(ks[4], (F, Cin, 3, 3), jnp.float32) * std,
        "kpt_conv_b": jnp.zeros((F,), jnp.float32),
        "kpt_out_w": jax.random.normal(ks[5], (kdim, F, 1, 1), jnp.float32) * std,
        "kpt_out_b": jnp.zeros((kdim,), jnp.float32),
    }

    cls_feat = jax.random.normal(ks[6], (B, Cin, H, W), jnp.float32)
    pts_feat = jax.random.normal(ks[7], (B, Cin, H, W), jnp.float32)

    fwd = jax.jit(kpdet_forward)
    cls_score_map, bbox_offset, kpt_offset = jax.block_until_ready(
        fwd(params, cls_feat, pts_feat))

    assert cls_score_map.shape == (B, cls_out_channels, H, W)
    assert bbox_offset.shape == (B, 4, H, W)
    assert kpt_offset.shape == (B, kdim, H, W)

    # sanity check vs pure-JAX f32 reference (tolerance loosened for bf16 MXU inputs)
    ref = _ref_forward(params, cls_feat, pts_feat)
    for got, want in zip((cls_score_map, bbox_offset, kpt_offset), ref):
        assert jnp.allclose(got, want, rtol=2e-2, atol=2e-3), "mismatch vs reference"

    print("KERNEL_OK")
</pallas_src>

<mosaic_0001>
module attributes {stable_mosaic.version = 11 : i64} {
  func.func @_kpdet_fused_kernel(%arg0: i32, %arg1: i32, %arg2: memref<1x288x256xbf16, #tpu.memory_space<vmem>>, %arg3: memref<1x288x256xbf16, #tpu.memory_space<vmem>>, %arg4: memref<32x288xbf16, #tpu.memory_space<vmem>>, %arg5: memref<32x1xf32, #tpu.memory_space<vmem>>, %arg6: memref<8x32xbf16, #tpu.memory_space<vmem>>, %arg7: memref<8x1xf32, #tpu.memory_space<vmem>>, %arg8: memref<32x288xbf16, #tpu.memory_space<vmem>>, %arg9: memref<32x1xf32, #tpu.memory_space<vmem>>, %arg10: memref<34x32xbf16, #tpu.memory_space<vmem>>, %arg11: memref<34x1xf32, #tpu.memory_space<vmem>>, %arg12: memref<1x8x256xf32, #tpu.memory_space<vmem>>, %arg13: memref<1x34x256xf32, #tpu.memory_space<vmem>>, %arg14: memref<1x4x256xf32, #tpu.memory_space<vmem>>) attributes {dimension_semantics = [#tpu.dimension_semantics<parallel>, #tpu.dimension_semantics<parallel>], iteration_bounds = array<i64: 2, 1>, scalar_prefetch = 0 : i64, scratch_operands = 0 : i64, tpu.core_type = #tpu.core_type<tc>, window_params = [{transform_indices = @transform_0, window_bounds = array<i64: 1, 288, 256>}, {transform_indices = @transform_1, window_bounds = array<i64: 1, 288, 256>}, {pipeline_mode = #tpu.pipeline_mode<synchronous>, transform_indices = @transform_2, window_bounds = array<i64: 32, 288>}, {pipeline_mode = #tpu.pipeline_mode<synchronous>, transform_indices = @transform_3, window_bounds = array<i64: 32, 1>}, {pipeline_mode = #tpu.pipeline_mode<synchronous>, transform_indices = @transform_4, window_bounds = array<i64: 8, 32>}, {pipeline_mode = #tpu.pipeline_mode<synchronous>, transform_indices = @transform_5, window_bounds = array<i64: 8, 1>}, {pipeline_mode = #tpu.pipeline_mode<synchronous>, transform_indices = @transform_6, window_bounds = array<i64: 32, 288>}, {pipeline_mode = #tpu.pipeline_mode<synchronous>, transform_indices = @transform_7, window_bounds = array<i64: 32, 1>}, {pipeline_mode = #tpu.pipeline_mode<synchronous>, transform_indices = @transform_8, window_bounds = array<i64: 34, 32>}, {pipeline_mode = #tpu.pipeline_mode<synchronous>, transform_indices = @transform_9, window_bounds = array<i64: 34, 1>}, {transform_indices = @transform_10, window_bounds = array<i64: 1, 8, 256>}, {transform_indices = @transform_11, window_bounds = array<i64: 1, 34, 256>}, {transform_indices = @transform_12, window_bounds = array<i64: 1, 4, 256>}]} {
    %c0 = arith.constant 0 : index
    %c0_0 = arith.constant 0 : index
    %0 = vector.load %arg4[%c0, %c0_0] : memref<32x288xbf16, #tpu.memory_space<vmem>>, vector<32x288xbf16>
    %c0_1 = arith.constant 0 : index
    %c0_2 = arith.constant 0 : index
    %c0_3 = arith.constant 0 : index
    %1 = vector.load %arg2[%c0_1, %c0_2, %c0_3] : memref<1x288x256xbf16, #tpu.memory_space<vmem>>, vector<1x288x256xbf16>
    %2 = vector.shape_cast %1 : vector<1x288x256xbf16> to vector<288x256xbf16>
    %cst = arith.constant dense<0.000000e+00> : vector<32x256xf32>
    %3 = tpu.matmul %0, %2, %cst {dimension_numbers = #tpu.dot_dimension_numbers<[1], [0], [0], [1], [0, 0, 1, 1], [], []>} : vector<32x288xbf16>, vector<288x256xbf16>, vector<32x256xf32> -> vector<32x256xf32>
    %c0_4 = arith.constant 0 : index
    %c0_5 = arith.constant 0 : index
    %4 = vector.load %arg5[%c0_4, %c0_5] : memref<32x1xf32, #tpu.memory_space<vmem>>, vector<32x1xf32>
    %5 = vector.broadcast %4 : vector<32x1xf32> to vector<32x256xf32>
    %6 = arith.addf %3, %5 : vector<32x256xf32>
    %cst_6 = arith.constant 0.000000e+00 : f32
    %7 = vector.broadcast %cst_6 : f32 to vector<32x256xf32>
    %8 = arith.maximumf %6, %7 : vector<32x256xf32>
    %c0_7 = arith.constant 0 : index
    %c0_8 = arith.constant 0 : index
    %9 = vector.load %arg6[%c0_7, %c0_8] : memref<8x32xbf16, #tpu.memory_space<vmem>>, vector<8x32xbf16>
    %10 = arith.truncf %8 : vector<32x256xf32> to vector<32x256xbf16>
    %cst_9 = arith.constant dense<0.000000e+00> : vector<8x256xf32>
    %11 = tpu.matmul %9, %10, %cst_9 {dimension_numbers = #tpu.dot_dimension_numbers<[1], [0], [0], [1], [0, 0, 1, 1], [], []>} : vector<8x32xbf16>, vector<32x256xbf16>, vector<8x256xf32> -> vector<8x256xf32>
    %c0_10 = arith.constant 0 : index
    %c0_11 = arith.constant 0 : index
    %12 = vector.load %arg7[%c0_10, %c0_11] : memref<8x1xf32, #tpu.memory_space<vmem>>, vector<8x1xf32>
    %13 = vector.broadcast %12 : vector<8x1xf32> to vector<8x256xf32>
    %14 = arith.addf %11, %13 : vector<8x256xf32>
    %c0_12 = arith.constant 0 : index
    %c0_13 = arith.constant 0 : index
    %c0_14 = arith.constant 0 : index
    %15 = vector.load %arg12[%c0_12, %c0_13, %c0_14] : memref<1x8x256xf32, #tpu.memory_space<vmem>>, vector<1x8x256xf32>
    %16 = vector.shape_cast %15 : vector<1x8x256xf32> to vector<8x256xf32>
    %17 = vector.shape_cast %14 : vector<8x256xf32> to vector<1x8x256xf32>
    tpu.vector_store %arg12[%c0_12, %c0_13, %c0_14], %17 {strides = array<i32>} : memref<1x8x256xf32, #tpu.memory_space<vmem>>, vector<1x8x256xf32>,
    %c0_15 = arith.constant 0 : index
    %c0_16 = arith.constant 0 : index
    %18 = vector.load %arg8[%c0_15, %c0_16] : memref<32x288xbf16, #tpu.memory_space<vmem>>, vector<32x288xbf16>
    %c0_17 = arith.constant 0 : index
    %c0_18 = arith.constant 0 : index
    %c0_19 = arith.constant 0 : index
    %19 = vector.load %arg3[%c0_17, %c0_18, %c0_19] : memref<1x288x256xbf16, #tpu.memory_space<vmem>>, vector<1x288x256xbf16>
    %20 = vector.shape_cast %19 : vector<1x288x256xbf16> to vector<288x256xbf16>
    %cst_20 = arith.constant dense<0.000000e+00> : vector<32x256xf32>
    %21 = tpu.matmul %18, %20, %cst_20 {dimension_numbers = #tpu.dot_dimension_numbers<[1], [0], [0], [1], [0, 0, 1, 1], [], []>} : vector<32x288xbf16>, vector<288x256xbf16>, vector<32x256xf32> -> vector<32x256xf32>
    %c0_21 = arith.constant 0 : index
    %c0_22 = arith.constant 0 : index
    %22 = vector.load %arg9[%c0_21, %c0_22] : memref<32x1xf32, #tpu.memory_space<vmem>>, vector<32x1xf32>
    %23 = vector.broadcast %22 : vector<32x1xf32> to vector<32x256xf32>
    %24 = arith.addf %21, %23 : vector<32x256xf32>
    %cst_23 = arith.constant 0.000000e+00 : f32
    %25 = vector.broadcast %cst_23 : f32 to vector<32x256xf32>
    %26 = arith.maximumf %24, %25 : vector<32x256xf32>
    %c0_24 = arith.constant 0 : index
    %c0_25 = arith.constant 0 : index
    %27 = vector.load %arg10[%c0_24, %c0_25] : memref<34x32xbf16, #tpu.memory_space<vmem>>, vector<34x32xbf16>
    %28 = arith.truncf %26 : vector<32x256xf32> to vector<32x256xbf16>
    %cst_26 = arith.constant dense<0.000000e+00> : vector<34x256xf32>
    %29 = tpu.matmul %27, %28, %cst_26 {dimension_numbers = #tpu.dot_dimension_numbers<[1], [0], [0], [1], [0, 0, 1, 1], [], []>} : vector<34x32xbf16>, vector<32x256xbf16>, vector<34x256xf32> -> vector<34x256xf32>
    %c0_27 = arith.constant 0 : index
    %c0_28 = arith.constant 0 : index
    %30 = vector.load %arg11[%c0_27, %c0_28] : memref<34x1xf32, #tpu.memory_space<vmem>>, vector<34x1xf32>
    %31 = vector.broadcast %30 : vector<34x1xf32> to vector<34x256xf32>
    %32 = arith.addf %29, %31 : vector<34x256xf32>
    %c0_29 = arith.constant 0 : index
    %c0_30 = arith.constant 0 : index
    %c0_31 = arith.constant 0 : index
    %33 = vector.load %arg13[%c0_29, %c0_30, %c0_31] : memref<1x34x256xf32, #tpu.memory_space<vmem>>, vector<1x34x256xf32>
    %34 = vector.shape_cast %33 : vector<1x34x256xf32> to vector<34x256xf32>
    %35 = vector.shape_cast %32 : vector<34x256xf32> to vector<1x34x256xf32>
    tpu.vector_store %arg13[%c0_29, %c0_30, %c0_31], %35 {strides = array<i32>} : memref<1x34x256xf32, #tpu.memory_space<vmem>>, vector<1x34x256xf32>,
    %36 = vector.extract_strided_slice %32 {offsets = [0, 0], sizes = [1, 256], strides = [1, 1]} : vector<34x256xf32> to vector<1x256xf32>
    %37 = vector.extract_strided_slice %32 {offsets = [0, 0], sizes = [1, 256], strides = [1, 1]} : vector<34x256xf32> to vector<1x256xf32>
    %38 = vector.extract_strided_slice %32 {offsets = [1, 0], sizes = [1, 256], strides = [1, 1]} : vector<34x256xf32> to vector<1x256xf32>
    %39 = vector.extract_strided_slice %32 {offsets = [1, 0], sizes = [1, 256], strides = [1, 1]} : vector<34x256xf32> to vector<1x256xf32>
    %40 = vector.extract_strided_slice %32 {offsets = [2, 0], sizes = [1, 256], strides = [1, 1]} : vector<34x256xf32> to vector<1x256xf32>
    %41 = vector.extract_strided_slice %32 {offsets = [3, 0], sizes = [1, 256], strides = [1, 1]} : vector<34x256xf32> to vector<1x256xf32>
    %42 = arith.minimumf %36, %40 : vector<1x256xf32>
    %43 = arith.maximumf %37, %40 : vector<1x256xf32>
    %44 = arith.minimumf %38, %41 : vector<1x256xf32>
    %45 = arith.maximumf %39, %41 : vector<1x256xf32>
    %46 = vector.extract_strided_slice %32 {offsets = [4, 0], sizes = [1, 256], strides = [1, 1]} : vector<34x256xf32> to vector<1x256xf32>
    %47 = vector.extract_strided_slice %32 {offsets = [5, 0], sizes = [1, 256], strides = [1, 1]} : vector<34x256xf32> to vector<1x256xf32>
    %48 = arith.minimumf %42, %46 : vector<1x256xf32>
    %49 = arith.maximumf %43, %46 : vector<1x256xf32>
    %50 = arith.minimumf %44, %47 : vector<1x256xf32>
    %51 = arith.maximumf %45, %47 : vector<1x256xf32>
    %52 = vector.extract_strided_slice %32 {offsets = [6, 0], sizes = [1, 256], strides = [1, 1]} : vector<34x256xf32> to vector<1x256xf32>
    %53 = vector.extract_strided_slice %32 {offsets = [7, 0], sizes = [1, 256], strides = [1, 1]} : vector<34x256xf32> to vector<1x256xf32>
    %54 = arith.minimumf %48, %52 : vector<1x256xf32>
    %55 = arith.maximumf %49, %52 : vector<1x256xf32>
    %56 = arith.minimumf %50, %53 : vector<1x256xf32>
    %57 = arith.maximumf %51, %53 : vector<1x256xf32>
    %58 = vector.extract_strided_slice %32 {offsets = [8, 0], sizes = [1, 256], strides = [1, 1]} : vector<34x256xf32> to vector<1x256xf32>
    %59 = vector.extract_strided_slice %32 {offsets = [9, 0], sizes = [1, 256], strides = [1, 1]} : vector<34x256xf32> to vector<1x256xf32>
    %60 = arith.minimumf %54, %58 : vector<1x256xf32>
    %61 = arith.maximumf %55, %58 : vector<1x256xf32>
    %62 = arith.minimumf %56, %59 : vector<1x256xf32>
    %63 = arith.maximumf %57, %59 : vector<1x256xf32>
    %64 = vector.extract_strided_slice %32 {offsets = [10, 0], sizes = [1, 256], strides = [1, 1]} : vector<34x256xf32> to vector<1x256xf32>
    %65 = vector.extract_strided_slice %32 {offsets = [11, 0], sizes = [1, 256], strides = [1, 1]} : vector<34x256xf32> to vector<1x256xf32>
    %66 = arith.minimumf %60, %64 : vector<1x256xf32>
    %67 = arith.maximumf %61, %64 : vector<1x256xf32>
    %68 = arith.minimumf %62, %65 : vector<1x256xf32>
    %69 = arith.maximumf %63, %65 : vector<1x256xf32>
    %70 = vector.extract_strided_slice %32 {offsets = [12, 0], sizes = [1, 256], strides = [1, 1]} : vector<34x256xf32> to vector<1x256xf32>
    %71 = vector.extract_strided_slice %32 {offsets = [13, 0], sizes = [1, 256], strides = [1, 1]} : vector<34x256xf32> to vector<1x256xf32>
    %72 = arith.minimumf %66, %70 : vector<1x256xf32>
    %73 = arith.maximumf %67, %70 : vector<1x256xf32>
    %74 = arith.minimumf %68, %71 : vector<1x256xf32>
    %75 = arith.maximumf %69, %71 : vector<1x256xf32>
    %76 = vector.extract_strided_slice %32 {offsets = [14, 0], sizes = [1, 256], strides = [1, 1]} : vector<34x256xf32> to vector<1x256xf32>
    %77 = vector.extract_strided_slice %32 {offsets = [15, 0], sizes = [1, 256], strides = [1, 1]} : vector<34x256xf32> to vector<1x256xf32>
    %78 = arith.minimumf %72, %76 : vector<1x256xf32>
    %79 = arith.maximumf %73, %76 : vector<1x256xf32>
    %80 = arith.minimumf %74, %77 : vector<1x256xf32>
    %81 = arith.maximumf %75, %77 : vector<1x256xf32>
    %82 = vector.extract_strided_slice %32 {offsets = [16, 0], sizes = [1, 256], strides = [1, 1]} : vector<34x256xf32> to vector<1x256xf32>
    %83 = vector.extract_strided_slice %32 {offsets = [17, 0], sizes = [1, 256], strides = [1, 1]} : vector<34x256xf32> to vector<1x256xf32>
    %84 = arith.minimumf %78, %82 : vector<1x256xf32>
    %85 = arith.maximumf %79, %82 : vector<1x256xf32>
    %86 = arith.minimumf %80, %83 : vector<1x256xf32>
    %87 = arith.maximumf %81, %83 : vector<1x256xf32>
    %88 = vector.extract_strided_slice %32 {offsets = [18, 0], sizes = [1, 256], strides = [1, 1]} : vector<34x256xf32> to vector<1x256xf32>
    %89 = vector.extract_strided_slice %32 {offsets = [19, 0], sizes = [1, 256], strides = [1, 1]} : vector<34x256xf32> to vector<1x256xf32>
    %90 = arith.minimumf %84, %88 : vector<1x256xf32>
    %91 = arith.maximumf %85, %88 : vector<1x256xf32>
    %92 = arith.minimumf %86, %89 : vector<1x256xf32>
    %93 = arith.maximumf %87, %89 : vector<1x256xf32>
    %94 = vector.extract_strided_slice %32 {offsets = [20, 0], sizes = [1, 256], strides = [1, 1]} : vector<34x256xf32> to vector<1x256xf32>
    %95 = vector.extract_strided_slice %32 {offsets = [21, 0], sizes = [1, 256], strides = [1, 1]} : vector<34x256xf32> to vector<1x256xf32>
    %96 = arith.minimumf %90, %94 : vector<1x256xf32>
    %97 = arith.maximumf %91, %94 : vector<1x256xf32>
    %98 = arith.minimumf %92, %95 : vector<1x256xf32>
    %99 = arith.maximumf %93, %95 : vector<1x256xf32>
    %100 = vector.extract_strided_slice %32 {offsets = [22, 0], sizes = [1, 256], strides = [1, 1]} : vector<34x256xf32> to vector<1x256xf32>
    %101 = vector.extract_strided_slice %32 {offsets = [23, 0], sizes = [1, 256], strides = [1, 1]} : vector<34x256xf32> to vector<1x256xf32>
    %102 = arith.minimumf %96, %100 : vector<1x256xf32>
    %103 = arith.maximumf %97, %100 : vector<1x256xf32>
    %104 = arith.minimumf %98, %101 : vector<1x256xf32>
    %105 = arith.maximumf %99, %101 : vector<1x256xf32>
    %106 = vector.extract_strided_slice %32 {offsets = [24, 0], sizes = [1, 256], strides = [1, 1]} : vector<34x256xf32> to vector<1x256xf32>
    %107 = vector.extract_strided_slice %32 {offsets = [25, 0], sizes = [1, 256], strides = [1, 1]} : vector<34x256xf32> to vector<1x256xf32>
    %108 = arith.minimumf %102, %106 : vector<1x256xf32>
    %109 = arith.maximumf %103, %106 : vector<1x256xf32>
    %110 = arith.minimumf %104, %107 : vector<1x256xf32>
    %111 = arith.maximumf %105, %107 : vector<1x256xf32>
    %112 = vector.extract_strided_slice %32 {offsets = [26, 0], sizes = [1, 256], strides = [1, 1]} : vector<34x256xf32> to vector<1x256xf32>
    %113 = vector.extract_strided_slice %32 {offsets = [27, 0], sizes = [1, 256], strides = [1, 1]} : vector<34x256xf32> to vector<1x256xf32>
    %114 = arith.minimumf %108, %112 : vector<1x256xf32>
    %115 = arith.maximumf %109, %112 : vector<1x256xf32>
    %116 = arith.minimumf %110, %113 : vector<1x256xf32>
    %117 = arith.maximumf %111, %113 : vector<1x256xf32>
    %118 = vector.extract_strided_slice %32 {offsets = [28, 0], sizes = [1, 256], strides = [1, 1]} : vector<34x256xf32> to vector<1x256xf32>
    %119 = vector.extract_strided_slice %32 {offsets = [29, 0], sizes = [1, 256], strides = [1, 1]} : vector<34x256xf32> to vector<1x256xf32>
    %120 = arith.minimumf %114, %118 : vector<1x256xf32>
    %121 = arith.maximumf %115, %118 : vector<1x256xf32>
    %122 = arith.minimumf %116, %119 : vector<1x256xf32>
    %123 = arith.maximumf %117, %119 : vector<1x256xf32>
    %124 = vector.extract_strided_slice %32 {offsets = [30, 0], sizes = [1, 256], strides = [1, 1]} : vector<34x256xf32> to vector<1x256xf32>
    %125 = vector.extract_strided_slice %32 {offsets = [31, 0], sizes = [1, 256], strides = [1, 1]} : vector<34x256xf32> to vector<1x256xf32>
    %126 = arith.minimumf %120, %124 : vector<1x256xf32>
    %127 = arith.maximumf %121, %124 : vector<1x256xf32>
    %128 = arith.minimumf %122, %125 : vector<1x256xf32>
    %129 = arith.maximumf %123, %125 : vector<1x256xf32>
    %130 = vector.extract_strided_slice %32 {offsets = [32, 0], sizes = [1, 256], strides = [1, 1]} : vector<34x256xf32> to vector<1x256xf32>
    %131 = vector.extract_strided_slice %32 {offsets = [33, 0], sizes = [1, 256], strides = [1, 1]} : vector<34x256xf32> to vector<1x256xf32>
    %132 = arith.minimumf %126, %130 : vector<1x256xf32>
    %133 = arith.maximumf %127, %130 : vector<1x256xf32>
    %134 = arith.minimumf %128, %131 : vector<1x256xf32>
    %135 = arith.maximumf %129, %131 : vector<1x256xf32>
    %136 = tpu.concatenate %134, %132, %135, %133 in 0 : vector<1x256xf32>, vector<1x256xf32>, vector<1x256xf32>, vector<1x256xf32> -> vector<4x256xf32>
    %c0_32 = arith.constant 0 : index
    %c0_33 = arith.constant 0 : index
    %c0_34 = arith.constant 0 : index
    %137 = vector.load %arg14[%c0_32, %c0_33, %c0_34] : memref<1x4x256xf32, #tpu.memory_space<vmem>>, vector<1x4x256xf32>
    %138 = vector.shape_cast %137 : vector<1x4x256xf32> to vector<4x256xf32>
    %139 = vector.shape_cast %136 : vector<4x256xf32> to vector<1x4x256xf32>
    tpu.vector_store %arg14[%c0_32, %c0_33, %c0_34], %139 {strides = array<i32>} : memref<1x4x256xf32, #tpu.memory_space<vmem>>, vector<1x4x256xf32>,
    return
  }
  func.func @transform_0(%arg0: i32, %arg1: i32) -> (i32, i32, i32) {
    %c0_i32 = arith.constant 0 : i32
    %c0_i32_0 = arith.constant 0 : i32
    return %arg0, %c0_i32, %arg1 : i32, i32, i32
  }
  func.func @transform_1(%arg0: i32, %arg1: i32) -> (i32, i32, i32) {
    %c0_i32 = arith.constant 0 : i32
    %c0_i32_0 = arith.constant 0 : i32
    return %arg0, %c0_i32, %arg1 : i32, i32, i32
  }
  func.func @transform_2(%arg0: i32, %arg1: i32) -> (i32, i32) {
    %c0_i32 = arith.constant 0 : i32
    %c0_i32_0 = arith.constant 0 : i32
    %c0_i32_1 = arith.constant 0 : i32
    return %c0_i32, %c0_i32_0 : i32, i32
  }
  func.func @transform_3(%arg0: i32, %arg1: i32) -> (i32, i32) {
    %c0_i32 = arith.constant 0 : i32
    %c0_i32_0 = arith.constant 0 : i32
    %c0_i32_1 = arith.constant 0 : i32
    return %c0_i32, %c0_i32_0 : i32, i32
  }
  func.func @transform_4(%arg0: i32, %arg1: i32) -> (i32, i32) {
    %c0_i32 = arith.constant 0 : i32
    %c0_i32_0 = arith.constant 0 : i32
    %c0_i32_1 = arith.constant 0 : i32
    return %c0_i32, %c0_i32_0 : i32, i32
  }
  func.func @transform_5(%arg0: i32, %arg1: i32) -> (i32, i32) {
    %c0_i32 = arith.constant 0 : i32
    %c0_i32_0 = arith.constant 0 : i32
    %c0_i32_1 = arith.constant 0 : i32
    return %c0_i32, %c0_i32_0 : i32, i32
  }
  func.func @transform_6(%arg0: i32, %arg1: i32) -> (i32, i32) {
    %c0_i32 = arith.constant 0 : i32
    %c0_i32_0 = arith.constant 0 : i32
    %c0_i32_1 = arith.constant 0 : i32
    return %c0_i32, %c0_i32_0 : i32, i32
  }
  func.func @transform_7(%arg0: i32, %arg1: i32) -> (i32, i32) {
    %c0_i32 = arith.constant 0 : i32
    %c0_i32_0 = arith.constant 0 : i32
    %c0_i32_1 = arith.constant 0 : i32
    return %c0_i32, %c0_i32_0 : i32, i32
  }
  func.func @transform_8(%arg0: i32, %arg1: i32) -> (i32, i32) {
    %c0_i32 = arith.constant 0 : i32
    %c0_i32_0 = arith.constant 0 : i32
    %c0_i32_1 = arith.constant 0 : i32
    return %c0_i32, %c0_i32_0 : i32, i32
  }
  func.func @transform_9(%arg0: i32, %arg1: i32) -> (i32, i32) {
    %c0_i32 = arith.constant 0 : i32
    %c0_i32_0 = arith.constant 0 : i32
    %c0_i32_1 = arith.constant 0 : i32
    return %c0_i32, %c0_i32_0 : i32, i32
  }
  func.func @transform_10(%arg0: i32, %arg1: i32) -> (i32, i32, i32) {
    %c0_i32 = arith.constant 0 : i32
    %c0_i32_0 = arith.constant 0 : i32
    return %arg0, %c0_i32, %arg1 : i32, i32, i32
  }
  func.func @transform_11(%arg0: i32, %arg1: i32) -> (i32, i32, i32) {
    %c0_i32 = arith.constant 0 : i32
    %c0_i32_0 = arith.constant 0 : i32
    return %arg0, %c0_i32, %arg1 : i32, i32, i32
  }
  func.func @transform_12(%arg0: i32, %arg1: i32) -> (i32, i32, i32) {
    %c0_i32 = arith.constant 0 : i32
    %c0_i32_0 = arith.constant 0 : i32
    return %arg0, %c0_i32, %arg1 : i32, i32, i32
  }
}

</mosaic_0001>

<llo_original>
// kernel: kpdet_forward.1
$region0: #{kpdet_forward.1}
  #allocation0 [shape = 'u32[]', space=smem, size = 0x4, offset = 0x4, fixed_abs, tag = 'smem constant byte address 0x4 - core index']
  #allocation1 [shape = 'u32[144,128]{1,0:T(1,128)}', space=vmem, size = 0x12000, scoped, tag = 'internal scratch']
  %s0 = inlined_call_operand.vmem [shape: bf16[2,288,256], index: 0, kind: input, shape index: {}]
  %s1 = inlined_call_operand.vmem [shape: bf16[2,288,256], index: 1, kind: input, shape index: {}]
  %s2 = inlined_call_operand.vmem [shape: bf16[32,288], index: 2, kind: input, shape index: {}]
  %s3 = inlined_call_operand.vmem [shape: f32[32,1], index: 3, kind: input, shape index: {}]
  %s4 = inlined_call_operand.vmem [shape: bf16[8,32], index: 4, kind: input, shape index: {}]
  %s5 = inlined_call_operand.vmem [shape: f32[8,1], index: 5, kind: input, shape index: {}]
  %s6 = inlined_call_operand.vmem [shape: bf16[32,288], index: 6, kind: input, shape index: {}]
  %s7 = inlined_call_operand.vmem [shape: f32[32,1], index: 7, kind: input, shape index: {}]
  %s8 = inlined_call_operand.vmem [shape: bf16[34,32], index: 8, kind: input, shape index: {}]
  %s9 = inlined_call_operand.vmem [shape: f32[34,1], index: 9, kind: input, shape index: {}]
  %s10 = inlined_call_operand.vmem [shape: f32[2,8,256], index: 10, kind: output, shape index: {0}]
  %s11 = inlined_call_operand.vmem [shape: f32[2,34,256], index: 11, kind: output, shape index: {1}]
  %s12 = inlined_call_operand.vmem [shape: f32[2,4,256], index: 12, kind: output, shape index: {2}]
  %13 = xla_tuple %s10, %s11, %s12
  %s14 = sld [smem:[#allocation0]]
  $region89: #{kpdet_forward.1} parent=0
    _
  %s16 = ssub.s32 1, %s14
  %s17 = scalar_select 0, %s16, %s14
  loop: start=0, step=1, limit=4
  $region2: #{kpdet_forward.1} parent=0 // loop_pre_header
    _
  $region3: #{kpdet_forward.1} parent=0 // loop_header
    %s19 = sphi 0, %s23
    %p20 = scmp.ge.s32.totalorder %s19, 4
    %s26 = sphi 0, %s38
    %s27 = sphi 0, %s34
    %s28 = sphi 0, %s26
    %s29 = sphi 0, %s27
    %s30 = sphi 0, %s28
    %s31 = sphi 0, %s29
    %s43 = sphi 0, %s45
    %s46 = sphi 0, %s43
    %s47 = sphi 0, %s46
    %s63 = sphi 0, %s47
    %s71 = sphi 0, %s73
    %s74 = sphi 0, %s71
    %s75 = sphi 0, %s74
    %s91 = sphi 0, %s75
    %s95 = sphi 0, %s95
    %s97 = sphi 0, %s95
    %s98 = sphi 0, %s97
    %s112 = sphi 0, %s98
    %s116 = sphi 0, %s116
    %s118 = sphi 0, %s116
    %s119 = sphi 0, %s118
    %s133 = sphi 0, %s119
    %s137 = sphi 0, %s137
    %s139 = sphi 0, %s137
    %s140 = sphi 0, %s139
    %s154 = sphi 0, %s140
    %s158 = sphi 0, %s158
    %s160 = sphi 0, %s158
    %s161 = sphi 0, %s160
    %s175 = sphi 0, %s161
    %s179 = sphi 0, %s179
    %s181 = sphi 0, %s179
    %s182 = sphi 0, %s181
    %s196 = sphi 0, %s182
    %s200 = sphi 0, %s200
    %s202 = sphi 0, %s200
    %s203 = sphi 0, %s202
    %s217 = sphi 0, %s203
    %s221 = sphi 0, %s221
    %s223 = sphi 0, %s221
    %s224 = sphi 0, %s223
    %s238 = sphi 0, %s224
    %s242 = sphi 0, %s242
    %s244 = sphi 0, %s242
    %s245 = sphi 0, %s244
    %s259 = sphi 0, %s245
    %s267 = sphi 0, %s269
    %s270 = sphi 0, %s267
    %s271 = sphi 0, %s270
    %s287 = sphi 0, %s271
    %s295 = sphi 0, %s297
    %s298 = sphi 0, %s295
    %s299 = sphi 0, %s298
    %s315 = sphi 0, %s299
    %s323 = sphi 0, %s325
    %s326 = sphi 0, %s323
    %s327 = sphi 0, %s326
    %s343 = sphi 0, %s327
  $region4: #{kpdet_forward.1} parent=0 // loop_header_branch
    %22 = sbr.rel (%p20) target = $region8
  $region5: #{kpdet_forward.1} parent=0 // loop_body
    %s24 = ssub.s32 %s19, 1
    %s25 = ssub.s32 %s19, 2
    %s32 = sadd.s32 1, %s27
    %p33 = scmp.ge.s32.totalorder %s32, 1
    %s34 = scalar_select %p33, 0, %s32
    %s35 = sadd.s32 1, %s26
    %s36 = scalar_select %p33, %s35, %s26
    %p37 = scmp.ge.s32.totalorder %s36, 2
    %s38 = scalar_select %p37, 0, %s36
    %s39 = ssub.s32 %s26, %s38
    %s40 = ssub.s32 %s27, %s34
    %s41 = sor.u32 %s39, %s40
    %p42 = scmp.eq.s32.totalorder %s41, 0
    %s44 = sadd.s32 %s43, 1
    %s45 = scalar_select %p42, %s43, %s44
    %p48 = pneg %p42
    %p49 = scmp.eq.s32.totalorder %s19, 1
    %p50 = por %p48, %p49
    %p51 = scmp.ne.s32.totalorder %s43, %s46
    %p52 = scmp.eq.s32.totalorder %s19, 0
    %p53 = por %p51, %p52
    %p54 = scmp.ne.s32.totalorder %s43, %s46
    %p55 = scmp.eq.s32.totalorder %s24, 1
    %p56 = por %p54, %p55
    %p57 = scmp.ne.s32.totalorder %s46, %s47
    %p58 = scmp.eq.s32.totalorder %s24, 0
    %p59 = por %p57, %p58
    %p60 = scmp.ne.s32.totalorder %s46, %s47
    %p61 = scmp.eq.s32.totalorder %s25, 1
    %p62 = por %p60, %p61
    %p64 = scmp.ne.s32.totalorder %s47, %s63
    %p65 = scmp.eq.s32.totalorder %s25, 0
    %p66 = por %p64, %p65
    %s67 = ssub.s32 %s26, %s38
    %s68 = ssub.s32 %s27, %s34
    %s69 = sor.u32 %s67, %s68
    %p70 = scmp.eq.s32.totalorder %s69, 0
    %s72 = sadd.s32 %s71, 1
    %s73 = scalar_select %p70, %s71, %s72
    %p76 = pneg %p70
    %p77 = scmp.eq.s32.totalorder %s19, 1
    %p78 = por %p76, %p77
    %p79 = scmp.ne.s32.totalorder %s71, %s74
    %p80 = scmp.eq.s32.totalorder %s19, 0
    %p81 = por %p79, %p80
    %p82 = scmp.ne.s32.totalorder %s71, %s74
    %p83 = scmp.eq.s32.totalorder %s24, 1
    %p84 = por %p82, %p83
    %p85 = scmp.ne.s32.totalorder %s74, %s75
    %p86 = scmp.eq.s32.totalorder %s24, 0
    %p87 = por %p85, %p86
    %p88 = scmp.ne.s32.totalorder %s74, %s75
    %p89 = scmp.eq.s32.totalorder %s25, 1
    %p90 = por %p88, %p89
    %p92 = scmp.ne.s32.totalorder %s75, %s91
    %p93 = scmp.eq.s32.totalorder %s25, 0
    %p94 = por %p92, %p93
    %s96 = sadd.s32 %s95, 1
    %p99 = scmp.eq.s32.totalorder %s19, 1
    %p100 = scmp.ne.s32.totalorder %s95, %s97
    %p101 = scmp.eq.s32.totalorder %s19, 0
    %p102 = por %p100, %p101
    %p103 = scmp.ne.s32.totalorder %s95, %s97
    %p104 = scmp.eq.s32.totalorder %s24, 1
    %p105 = por %p103, %p104
    %p106 = scmp.ne.s32.totalorder %s97, %s98
    %p107 = scmp.eq.s32.totalorder %s24, 0
    %p108 = por %p106, %p107
    %p109 = scmp.ne.s32.totalorder %s97, %s98
    %p110 = scmp.eq.s32.totalorder %s25, 1
    %p111 = por %p109, %p110
    %p113 = scmp.ne.s32.totalorder %s98, %s112
    %p114 = scmp.eq.s32.totalorder %s25, 0
    %p115 = por %p113, %p114
    %s117 = sadd.s32 %s116, 1
    %p120 = scmp.eq.s32.totalorder %s19, 1
    %p121 = scmp.ne.s32.totalorder %s116, %s118
    %p122 = scmp.eq.s32.totalorder %s19, 0
    %p123 = por %p121, %p122
    %p124 = scmp.ne.s32.totalorder %s116, %s118
    %p125 = scmp.eq.s32.totalorder %s24, 1
    %p126 = por %p124, %p125
    %p127 = scmp.ne.s32.totalorder %s118, %s119
    %p128 = scmp.eq.s32.totalorder %s24, 0
    %p129 = por %p127, %p128
    %p130 = scmp.ne.s32.totalorder %s118, %s119
    %p131 = scmp.eq.s32.totalorder %s25, 1
    %p132 = por %p130, %p131
    %p134 = scmp.ne.s32.totalorder %s119, %s133
    %p135 = scmp.eq.s32.totalorder %s25, 0
    %p136 = por %p134, %p135
    %s138 = sadd.s32 %s137, 1
    %p141 = scmp.eq.s32.totalorder %s19, 1
    %p142 = scmp.ne.s32.totalorder %s137, %s139
    %p143 = scmp.eq.s32.totalorder %s19, 0
    %p144 = por %p142, %p143
    %p145 = scmp.ne.s32.totalorder %s137, %s139
    %p146 = scmp.eq.s32.totalorder %s24, 1
    %p147 = por %p145, %p146
    %p148 = scmp.ne.s32.totalorder %s139, %s140
    %p149 = scmp.eq.s32.totalorder %s24, 0
    %p150 = por %p148, %p149
    %p151 = scmp.ne.s32.totalorder %s139, %s140
    %p152 = scmp.eq.s32.totalorder %s25, 1
    %p153 = por %p151, %p152
    %p155 = scmp.ne.s32.totalorder %s140, %s154
    %p156 = scmp.eq.s32.totalorder %s25, 0
    %p157 = por %p155, %p156
    %s159 = sadd.s32 %s158, 1
    %p162 = scmp.eq.s32.totalorder %s19, 1
    %p163 = scmp.ne.s32.totalorder %s158, %s160
    %p164 = scmp.eq.s32.totalorder %s19, 0
    %p165 = por %p163, %p164
    %p166 = scmp.ne.s32.totalorder %s158, %s160
    %p167 = scmp.eq.s32.totalorder %s24, 1
    %p168 = por %p166, %p167
    %p169 = scmp.ne.s32.totalorder %s160, %s161
    %p170 = scmp.eq.s32.totalorder %s24, 0
    %p171 = por %p169, %p170
    %p172 = scmp.ne.s32.totalorder %s160, %s161
    %p173 = scmp.eq.s32.totalorder %s25, 1
    %p174 = por %p172, %p173
    %p176 = scmp.ne.s32.totalorder %s161, %s175
    %p177 = scmp.eq.s32.totalorder %s25, 0
    %p178 = por %p176, %p177
    %s180 = sadd.s32 %s179, 1
    %p183 = scmp.eq.s32.totalorder %s19, 1
    %p184 = scmp.ne.s32.totalorder %s179, %s181
    %p185 = scmp.eq.s32.totalorder %s19, 0
    %p186 = por %p184, %p185
    %p187 = scmp.ne.s32.totalorder %s179, %s181
    %p188 = scmp.eq.s32.totalorder %s24, 1
    %p189 = por %p187, %p188
    %p190 = scmp.ne.s32.totalorder %s181, %s182
    %p191 = scmp.eq.s32.totalorder %s24, 0
    %p192 = por %p190, %p191
    %p193 = scmp.ne.s32.totalorder %s181, %s182
    %p194 = scmp.eq.s32.totalorder %s25, 1
    %p195 = por %p193, %p194
    %p197 = scmp.ne.s32.totalorder %s182, %s196
    %p198 = scmp.eq.s32.totalorder %s25, 0
    %p199 = por %p197, %p198
    %s201 = sadd.s32 %s200, 1
    %p204 = scmp.eq.s32.totalorder %s19, 1
    %p205 = scmp.ne.s32.totalorder %s200, %s202
    %p206 = scmp.eq.s32.totalorder %s19, 0
    %p207 = por %p205, %p206
    %p208 = scmp.ne.s32.totalorder %s200, %s202
    %p209 = scmp.eq.s32.totalorder %s24, 1
    %p210 = por %p208, %p209
    %p211 = scmp.ne.s32.totalorder %s202, %s203
    %p212 = scmp.eq.s32.totalorder %s24, 0
    %p213 = por %p211, %p212
    %p214 = scmp.ne.s32.totalorder %s202, %s203
    %p215 = scmp.eq.s32.totalorder %s25, 1
    %p216 = por %p214, %p215
    %p218 = scmp.ne.s32.totalorder %s203, %s217
    %p219 = scmp.eq.s32.totalorder %s25, 0
    %p220 = por %p218, %p219
    %s222 = sadd.s32 %s221, 1
    %p225 = scmp.eq.s32.totalorder %s19, 1
    %p226 = scmp.ne.s32.totalorder %s221, %s223
    %p227 = scmp.eq.s32.totalorder %s19, 0
    %p228 = por %p226, %p227
    %p229 = scmp.ne.s32.totalorder %s221, %s223
    %p230 = scmp.eq.s32.totalorder %s24, 1
    %p231 = por %p229, %p230
    %p232 = scmp.ne.s32.totalorder %s223, %s224
    %p233 = scmp.eq.s32.totalorder %s24, 0
    %p234 = por %p232, %p233
    %p235 = scmp.ne.s32.totalorder %s223, %s224
    %p236 = scmp.eq.s32.totalorder %s25, 1
    %p237 = por %p235, %p236
    %p239 = scmp.ne.s32.totalorder %s224, %s238
    %p240 = scmp.eq.s32.totalorder %s25, 0
    %p241 = por %p239, %p240
    %s243 = sadd.s32 %s242, 1
    %p246 = scmp.eq.s32.totalorder %s19, 1
    %p247 = scmp.ne.s32.totalorder %s242, %s244
    %p248 = scmp.eq.s32.totalorder %s19, 0
    %p249 = por %p247, %p248
    %p250 = scmp.ne.s32.totalorder %s242, %s244
    %p251 = scmp.eq.s32.totalorder %s24, 1
    %p252 = por %p250, %p251
    %p253 = scmp.ne.s32.totalorder %s244, %s245
    %p254 = scmp.eq.s32.totalorder %s24, 0
    %p255 = por %p253, %p254
    %p256 = scmp.ne.s32.totalorder %s244, %s245
    %p257 = scmp.eq.s32.totalorder %s25, 1
    %p258 = por %p256, %p257
    %p260 = scmp.ne.s32.totalorder %s245, %s259
    %p261 = scmp.eq.s32.totalorder %s25, 0
    %p262 = por %p260, %p261
    %s263 = ssub.s32 %s26, %s38
    %s264 = ssub.s32 %s27, %s34
    %s265 = sor.u32 %s263, %s264
    %p266 = scmp.eq.s32.totalorder %s265, 0
    %s268 = sadd.s32 %s267, 1
    %s269 = scalar_select %p266, %s267, %s268
    %p272 = pneg %p266
    %p273 = scmp.eq.s32.totalorder %s19, 1
    %p274 = por %p272, %p273
    %p275 = scmp.ne.s32.totalorder %s267, %s270
    %p276 = scmp.eq.s32.totalorder %s19, 0
    %p277 = por %p275, %p276
    %p278 = scmp.ne.s32.totalorder %s267, %s270
    %p279 = scmp.eq.s32.totalorder %s24, 1
    %p280 = por %p278, %p279
    %p281 = scmp.ne.s32.totalorder %s270, %s271
    %p282 = scmp.eq.s32.totalorder %s24, 0
    %p283 = por %p281, %p282
    %p284 = scmp.ne.s32.totalorder %s270, %s271
    %p285 = scmp.eq.s32.totalorder %s25, 1
    %p286 = por %p284, %p285
    %p288 = scmp.ne.s32.totalorder %s271, %s287
    %p289 = scmp.eq.s32.totalorder %s25, 0
    %p290 = por %p288, %p289
    %s291 = ssub.s32 %s26, %s38
    %s292 = ssub.s32 %s27, %s34
    %s293 = sor.u32 %s291, %s292
    %p294 = scmp.eq.s32.totalorder %s293, 0
    %s296 = sadd.s32 %s295, 1
    %s297 = scalar_select %p294, %s295, %s296
    %p300 = pneg %p294
    %p301 = scmp.eq.s32.totalorder %s19, 1
    %p302 = por %p300, %p301
    %p303 = scmp.ne.s32.totalorder %s295, %s298
    %p304 = scmp.eq.s32.totalorder %s19, 0
    %p305 = por %p303, %p304
    %p306 = scmp.ne.s32.totalorder %s295, %s298
    %p307 = scmp.eq.s32.totalorder %s24, 1
    %p308 = por %p306, %p307
    %p309 = scmp.ne.s32.totalorder %s298, %s299
    %p310 = scmp.eq.s32.totalorder %s24, 0
    %p311 = por %p309, %p310
    %p312 = scmp.ne.s32.totalorder %s298, %s299
    %p313 = scmp.eq.s32.totalorder %s25, 1
    %p314 = por %p312, %p313
    %p316 = scmp.ne.s32.totalorder %s299, %s315
    %p317 = scmp.eq.s32.totalorder %s25, 0
    %p318 = por %p316, %p317
    %s319 = ssub.s32 %s26, %s38
    %s320 = ssub.s32 %s27, %s34
    %s321 = sor.u32 %s319, %s320
    %p322 = scmp.eq.s32.totalorder %s321, 0
    %s324 = sadd.s32 %s323, 1
    %s325 = scalar_select %p322, %s323, %s324
    %p328 = pneg %p322
    %p329 = scmp.eq.s32.totalorder %s19, 1
    %p330 = por %p328, %p329
    %p331 = scmp.ne.s32.totalorder %s323, %s326
    %p332 = scmp.eq.s32.totalorder %s19, 0
    %p333 = por %p331, %p332
    %p334 = scmp.ne.s32.totalorder %s323, %s326
    %p335 = scmp.eq.s32.totalorder %s24, 1
    %p336 = por %p334, %p335
    %p337 = scmp.ne.s32.totalorder %s326, %s327
    %p338 = scmp.eq.s32.totalorder %s24, 0
    %p339 = por %p337, %p338
    %p340 = scmp.ne.s32.totalorder %s326, %s327
    %p341 = scmp.eq.s32.totalorder %s25, 1
    %p342 = por %p340, %p341
    %p344 = scmp.ne.s32.totalorder %s327, %s343
    %p345 = scmp.eq.s32.totalorder %s25, 0
    %p346 = por %p344, %p345
    %p347 = scmp.le.s32.totalorder 1, %s19
    %p348 = scmp.lt.s32.totalorder %s19, 3
    %p349 = pnand %p347, %p348
    %p350 = pneg %p349
    // Predicated region
    $region9: #{kpdet_forward.1} parent=5 // pred_check
      _
    $region10: #{kpdet_forward.1} parent=5 // pred_check_branch
      %352 = sbr.rel (%p349) target = $region12
    $region11: #{kpdet_forward.1} parent=5 // pred_region
      %s353 = ssub.s32 %s19, 1
      // Predicated region
      $region13: #{kpdet_forward.1} parent=11 // pred_check
        %p354 = pneg %p108
      $region14: #{kpdet_forward.1} parent=11 // pred_check_branch
        %356 = sbr.rel (%p354) target = $region16
      $region15: #{kpdet_forward.1} parent=11 // pred_region
        _
      $region16: #{kpdet_forward.1} parent=11 // pred_fallthru
        _
      // Predicated region
      $region17: #{kpdet_forward.1} parent=11 // pred_check
        %p357 = pneg %p129
      $region18: #{kpdet_forward.1} parent=11 // pred_check_branch
        %359 = sbr.rel (%p357) target = $region20
      $region19: #{kpdet_forward.1} parent=11 // pred_region
        _
      $region20: #{kpdet_forward.1} parent=11 // pred_fallthru
        _
      // Predicated region
      $region21: #{kpdet_forward.1} parent=11 // pred_check
        %p360 = pneg %p150
      $region22: #{kpdet_forward.1} parent=11 // pred_check_branch
        %362 = sbr.rel (%p360) target = $region24
      $region23: #{kpdet_forward.1} parent=11 // pred_region
        _
      $region24: #{kpdet_forward.1} parent=11 // pred_fallthru
        _
      // Predicated region
      $region25: #{kpdet_forward.1} parent=11 // pred_check
        %p363 = pneg %p171
      $region26: #{kpdet_forward.1} parent=11 // pred_check_branch
        %365 = sbr.rel (%p363) target = $region28
      $region27: #{kpdet_forward.1} parent=11 // pred_region
        _
      $region28: #{kpdet_forward.1} parent=11 // pred_fallthru
        _
      // Predicated region
      $region29: #{kpdet_forward.1} parent=11 // pred_check
        %p366 = pneg %p192
      $region30: #{kpdet_forward.1} parent=11 // pred_check_branch
        %368 = sbr.rel (%p366) target = $region32
      $region31: #{kpdet_forward.1} parent=11 // pred_region
        _
      $region32: #{kpdet_forward.1} parent=11 // pred_fallthru
        _
      // Predicated region
      $region33: #{kpdet_forward.1} parent=11 // pred_check
        %p369 = pneg %p213
      $region34: #{kpdet_forward.1} parent=11 // pred_check_branch
        %371 = sbr.rel (%p369) target = $region36
      $region35: #{kpdet_forward.1} parent=11 // pred_region
        _
      $region36: #{kpdet_forward.1} parent=11 // pred_fallthru
        _
      // Predicated region
      $region37: #{kpdet_forward.1} parent=11 // pred_check
        %p372 = pneg %p234
      $region38: #{kpdet_forward.1} parent=11 // pred_check_branch
        %374 = sbr.rel (%p372) target = $region40
      $region39: #{kpdet_forward.1} parent=11 // pred_region
        _
      $region40: #{kpdet_forward.1} parent=11 // pred_fallthru
        _
      // Predicated region
      $region41: #{kpdet_forward.1} parent=11 // pred_check
        %p375 = pneg %p255
      $region42: #{kpdet_forward.1} parent=11 // pred_check_branch
        %377 = sbr.rel (%p375) target = $region44
      $region43: #{kpdet_forward.1} parent=11 // pred_region
        _
      $region44: #{kpdet_forward.1} parent=11 // pred_fallthru
        _
    $region12: #{kpdet_forward.1} parent=5 // pred_fallthru
      _
    %p378 = scmp.lt.s32.totalorder %s19, 2
    // Predicated region
    $region45: #{kpdet_forward.1} parent=5 // pred_check
      %p379 = pneg %p378
    $region46: #{kpdet_forward.1} parent=5 // pred_check_branch
      %381 = sbr.rel (%p379) target = $region48
    $region47: #{kpdet_forward.1} parent=5 // pred_region
      // Predicated region
      $region49: #{kpdet_forward.1} parent=47 // pred_check
        %p382 = pneg %p53
      $region50: #{kpdet_forward.1} parent=47 // pred_check_branch
        %384 = sbr.rel (%p382) target = $region52
      $region51: #{kpdet_forward.1} parent=47 // pred_region
        %s385 = smul.u32 2, %s27
        %p386 = scmp.lt.s32.totalorder %s26, 1
        %s387 = scalar_select %p386, %s26, 1
        %p388 = scmp.lt.s32.totalorder %s385, 1
        %s389 = scalar_select %p388, %s385, 1
        %s390 = smul.addr %s387, 72
        %s391 = sadd.s32 %s389, %s390
        %s392 = smul.addr %s391, 4
        %s393 = scalar_lea.vmem %s0, %s392
        %s394 = smul.u32 2, %s27
      $region52: #{kpdet_forward.1} parent=47 // pred_fallthru
        _
      // Predicated region
      $region53: #{kpdet_forward.1} parent=47 // pred_check
        %p395 = pneg %p81
      $region54: #{kpdet_forward.1} parent=47 // pred_check_branch
        %397 = sbr.rel (%p395) target = $region56
      $region55: #{kpdet_forward.1} parent=47 // pred_region
        %s398 = smul.u32 2, %s27
        %p399 = scmp.lt.s32.totalorder %s26, 1
        %s400 = scalar_select %p399, %s26, 1
        %p401 = scmp.lt.s32.totalorder %s398, 1
        %s402 = scalar_select %p401, %s398, 1
        %s403 = smul.addr %s400, 72
        %s404 = sadd.s32 %s402, %s403
        %s405 = smul.addr %s404, 4
        %s406 = scalar_lea.vmem %s1, %s405
        %s407 = smul.u32 2, %s27
      $region56: #{kpdet_forward.1} parent=47 // pred_fallthru
        _
    $region48: #{kpdet_forward.1} parent=5 // pred_fallthru
      _
    %p408 = scmp.le.s32.totalorder 1, %s19
    %p409 = scmp.lt.s32.totalorder %s19, 3
    %p410 = pnand %p408, %p409
    %p411 = pneg %p410
    // Predicated region
    $region57: #{kpdet_forward.1} parent=5 // pred_check
      _
    $region58: #{kpdet_forward.1} parent=5 // pred_check_branch
      %413 = sbr.rel (%p410) target = $region60
    $region59: #{kpdet_forward.1} parent=5 // pred_region
      %s414 = ssub.s32 %s19, 1
      %s415 = smul.u32 2, %s29
      %p416 = scmp.lt.s32.totalorder %s28, 1
      %s417 = scalar_select %p416, %s28, 1
      %p418 = scmp.lt.s32.totalorder %s415, 1
      %s419 = scalar_select %p418, %s415, 1
      %s420 = smul.addr %s417, 72
      %s421 = sadd.s32 %s419, %s420
      %s422 = smul.addr %s421, 4
      %s423 = scalar_lea.vmem %s0, %s422
      %p424 = pneg %p59
      %p425 = pneg %p56
      %s426 = smul.u32 2, %s29
      %p427 = scmp.lt.s32.totalorder %s28, 1
      %s428 = scalar_select %p427, %s28, 1
      %p429 = scmp.lt.s32.totalorder %s426, 1
      %s430 = scalar_select %p429, %s426, 1
      %s431 = smul.addr %s428, 72
      %s432 = sadd.s32 %s430, %s431
      %s433 = smul.addr %s432, 4
      %s434 = scalar_lea.vmem %s1, %s433
      %p435 = pneg %p87
      %p436 = pneg %p84
      %p437 = pneg %p108
      %p438 = pneg %p105
      %p439 = pneg %p129
      %p440 = pneg %p126
      %p441 = pneg %p150
      %p442 = pneg %p147
      %p443 = pneg %p171
      %p444 = pneg %p168
      %p445 = pneg %p192
      %p446 = pneg %p189
      %p447 = pneg %p213
      %p448 = pneg %p210
      %p449 = pneg %p234
      %p450 = pneg %p231
      %p451 = pneg %p255
      %p452 = pneg %p252
      %p453 = pneg %p283
      %p454 = pneg %p280
      %s455 = smul.u32 2, %s29
      %p456 = scmp.lt.s32.totalorder %s28, 1
      %s457 = scalar_select %p456, %s28, 1
      %p458 = scmp.lt.s32.totalorder %s455, 1
      %s459 = scalar_select %p458, %s455, 1
      %s460 = smul.addr %s457, 2
      %s461 = sadd.s32 %s459, %s460
      %s462 = smul.addr %s461, 8
      %s463 = scalar_lea.vmem %s10, %s462
      %p464 = pneg %p311
      %p465 = pneg %p308
      %s466 = smul.u32 2, %s29
      %p467 = scmp.lt.s32.totalorder %s28, 1
      %s468 = scalar_select %p467, %s28, 1
      %p469 = scmp.lt.s32.totalorder %s466, 1
      %s470 = scalar_select %p469, %s466, 1
      %s471 = smul.addr %s468, 10
      %s472 = sadd.s32 %s470, %s471
      %s473 = smul.addr %s472, 8
      %s474 = scalar_lea.vmem %s11, %s473
      %p475 = pneg %p339
      %p476 = pneg %p336
      %s477 = smul.u32 2, %s29
      %p478 = scmp.lt.s32.totalorder %s28, 1
      %s479 = scalar_select %p478, %s28, 1
      %p480 = scmp.lt.s32.totalorder %s477, 1
      %s481 = scalar_select %p480, %s477, 1
      %s482 = smul.addr %s479, 2
      %s483 = sadd.s32 %s481, %s482
      %s484 = smul.addr %s483, 4
      %s485 = scalar_lea.vmem %s12, %s484
      %s486 = smul.u32 2, %s29
      %p487 = scmp.lt.s32.totalorder %s28, 1
      %s488 = scalar_select %p487, %s28, 1
      %p489 = scmp.lt.s32.totalorder %s486, 1
      %s490 = scalar_select %p489, %s486, 1
      %s491 = smul.addr %s488, 72
      %s492 = sadd.s32 %s490, %s491
      %s493 = smul.addr %s492, 4
      %s494 = scalar_lea.vmem %s0, %s493
      %s495 = smul.u32 2, %s29
      %s496 = smul.u32 2, %s29
      %p497 = scmp.lt.s32.totalorder %s28, 1
      %s498 = scalar_select %p497, %s28, 1
      %p499 = scmp.lt.s32.totalorder %s496, 1
      %s500 = scalar_select %p499, %s496, 1
      %s501 = smul.addr %s498, 72
      %s502 = sadd.s32 %s500, %s501
      %s503 = smul.addr %s502, 4
      %s504 = scalar_lea.vmem %s1, %s503
      %s505 = smul.u32 2, %s29
      %s506 = smul.u32 2, %s29
      %p507 = scmp.lt.s32.totalorder %s28, 1
      %s508 = scalar_select %p507, %s28, 1
      %p509 = scmp.lt.s32.totalorder %s506, 1
      %s510 = scalar_select %p509, %s506, 1
      %s511 = smul.addr %s508, 2
      %s512 = sadd.s32 %s510, %s511
      %s513 = smul.addr %s512, 8
      %s514 = scalar_lea.vmem %s10, %s513
      %s515 = smul.u32 2, %s29
      %s516 = smul.u32 2, %s29
      %p517 = scmp.lt.s32.totalorder %s28, 1
      %s518 = scalar_select %p517, %s28, 1
      %p519 = scmp.lt.s32.totalorder %s516, 1
      %s520 = scalar_select %p519, %s516, 1
      %s521 = smul.addr %s518, 10
      %s522 = sadd.s32 %s520, %s521
      %s523 = smul.addr %s522, 8
      %s524 = scalar_lea.vmem %s11, %s523
      %s525 = smul.u32 2, %s29
      %s526 = smul.u32 2, %s29
      %p527 = scmp.lt.s32.totalorder %s28, 1
      %s528 = scalar_select %p527, %s28, 1
      %p529 = scmp.lt.s32.totalorder %s526, 1
      %s530 = scalar_select %p529, %s526, 1
      %s531 = smul.addr %s528, 2
      %s532 = sadd.s32 %s530, %s531
      %s533 = smul.addr %s532, 4
      %s534 = scalar_lea.vmem %s12, %s533
      %s535 = smul.u32 2, %s29
      %v537 = vld [vmem:[%s2] sm:$0xff]
      %v538 = vld [vmem:[%s2 + $0x8] sm:$0xf]
      %v539 = vld [vmem:[%s2 + $0xc] sm:$0xff]
      %v540 = vld [vmem:[%s2 + $0x14] sm:$0xf]
      %v541 = vld [vmem:[%s2 + $0x18] sm:$0xff]
      %v542 = vld [vmem:[%s2 + $0x20] sm:$0xf]
      %v543 = vld [vmem:[%s2 + $0x24] sm:$0xff]
      %v544 = vld [vmem:[%s2 + $0x2c] sm:$0xf]
      %v545 = vld [vmem:[%s494] sm:$0xff]
      %v546 = vld [vmem:[%s494 + $0x8] sm:$0xff]
      %v547 = vld [vmem:[%s494 + $0x10] sm:$0xff]
      %v548 = vld [vmem:[%s494 + $0x18] sm:$0xff]
      %v549 = vld [vmem:[%s494 + $0x20] sm:$0xff]
      %v550 = vld [vmem:[%s494 + $0x28] sm:$0xff]
      %v551 = vld [vmem:[%s494 + $0x30] sm:$0xff]
      %v552 = vld [vmem:[%s494 + $0x38] sm:$0xff]
      %v553 = vld [vmem:[%s494 + $0x40] sm:$0xff]
      %v554 = vld [vmem:[%s494 + $0x48] sm:$0xff]
      %v555 = vld [vmem:[%s494 + $0x50] sm:$0xff]
      %v556 = vld [vmem:[%s494 + $0x58] sm:$0xff]
      %v557 = vld [vmem:[%s494 + $0x60] sm:$0xff]
      %v558 = vld [vmem:[%s494 + $0x68] sm:$0xff]
      %v559 = vld [vmem:[%s494 + $0x70] sm:$0xff]
      %v560 = vld [vmem:[%s494 + $0x78] sm:$0xff]
      %v561 = vld [vmem:[%s494 + $0x80] sm:$0xff]
      %v562 = vld [vmem:[%s494 + $0x88] sm:$0xff]
      %v563 = vld [vmem:[%s494 + $0x90] sm:$0xff]
      %v564 = vld [vmem:[%s494 + $0x98] sm:$0xff]
      %v565 = vld [vmem:[%s494 + $0xa0] sm:$0xff]
      %v566 = vld [vmem:[%s494 + $0xa8] sm:$0xff]
      %v567 = vld [vmem:[%s494 + $0xb0] sm:$0xff]
      %v568 = vld [vmem:[%s494 + $0xb8] sm:$0xff]
      %v569 = vld [vmem:[%s494 + $0xc0] sm:$0xff]
      %v570 = vld [vmem:[%s494 + $0xc8] sm:$0xff]
      %v571 = vld [vmem:[%s494 + $0xd0] sm:$0xff]
      %v572 = vld [vmem:[%s494 + $0xd8] sm:$0xff]
      %v573 = vld [vmem:[%s494 + $0xe0] sm:$0xff]
      %v574 = vld [vmem:[%s494 + $0xe8] sm:$0xff]
      %v575 = vld [vmem:[%s494 + $0xf0] sm:$0xff]
      %v576 = vld [vmem:[%s494 + $0xf8] sm:$0xff]
      %v577 = vld [vmem:[%s494 + $0x100] sm:$0xff]
      %v578 = vld [vmem:[%s494 + $0x108] sm:$0xff]
      %v579 = vld [vmem:[%s494 + $0x110] sm:$0xff]
      %v580 = vld [vmem:[%s494 + $0x118] sm:$0xff]
      %v581 = vld [vmem:[%s3] sm:$0xff]
      %v582 = vld [vmem:[%s3 + $0x8] sm:$0xff]
      %v583 = vld [vmem:[%s3 + $0x10] sm:$0xff]
      %v584 = vld [vmem:[%s3 + $0x18] sm:$0xff]
      %586 = vset.pattern.permute.xlu0 0
      %587 = vperm.xlu0 %586, %v581
      %v588 = vpop.permute.xlu0 %587
      %591 = vset.pattern.permute.xlu0 0
      %592 = vperm.xlu0 %591, %v582
      %v593 = vpop.permute.xlu0 %592
      %596 = vset.pattern.permute.xlu0 0
      %597 = vperm.xlu0 %596, %v583
      %v598 = vpop.permute.xlu0 %597
      %601 = vset.pattern.permute.xlu0 0
      %602 = vperm.xlu0 %601, %v584
      %v603 = vpop.permute.xlu0 %602
      %v613 = vunpack.c.l.b16 %v537
      %v614 = vunpack.c.h.b16 %v537
      %v615 = vunpack.c.l.b16 %v538
      %v616 = vunpack.c.l.b16 %v539
      %v617 = vunpack.c.h.b16 %v539
      %v618 = vunpack.c.l.b16 %v540
      %v619 = vunpack.c.l.b16 %v541
      %v620 = vunpack.c.h.b16 %v541
      %v621 = vunpack.c.l.b16 %v542
      %v622 = vunpack.c.l.b16 %v543
      %v623 = vunpack.c.h.b16 %v543
      %v624 = vunpack.c.l.b16 %v544
      %v625 = vpack.c.b16 %v616, %v613
      %v626 = vpack.c.b16 %v617, %v614
      %v627 = vpack.c.b16 %v618, %v615
      %v628 = vpack.c.b16 %v622, %v619
      %v629 = vpack.c.b16 %v623, %v620
      %v630 = vpack.c.b16 %v624, %v621
      %v671 = vunpack.c.l.b16 %v545
      %v672 = vunpack.c.h.b16 %v545
      %v673 = vunpack.c.l.b16 %v546
      %v674 = vunpack.c.h.b16 %v546
      %v675 = vunpack.c.l.b16 %v547
      %v676 = vunpack.c.h.b16 %v547
      %v677 = vunpack.c.l.b16 %v548
      %v678 = vunpack.c.h.b16 %v548
      %v679 = vunpack.c.l.b16 %v549
      %v680 = vunpack.c.h.b16 %v549
      %v681 = vunpack.c.l.b16 %v550
      %v682 = vunpack.c.h.b16 %v550
      %v683 = vunpack.c.l.b16 %v551
      %v684 = vunpack.c.h.b16 %v551
      %v685 = vunpack.c.l.b16 %v552
      %v686 = vunpack.c.h.b16 %v552
      %v687 = vunpack.c.l.b16 %v553
      %v688 = vunpack.c.h.b16 %v553
      %v689 = vunpack.c.l.b16 %v554
      %v690 = vunpack.c.h.b16 %v554
      %v691 = vunpack.c.l.b16 %v555
      %v692 = vunpack.c.h.b16 %v555
      %v693 = vunpack.c.l.b16 %v556
      %v694 = vunpack.c.h.b16 %v556
      %v695 = vunpack.c.l.b16 %v557
      %v696 = vunpack.c.h.b16 %v557
      %v697 = vunpack.c.l.b16 %v558
      %v698 = vunpack.c.h.b16 %v558
      %v699 = vunpack.c.l.b16 %v559
      %v700 = vunpack.c.h.b16 %v559
      %v701 = vunpack.c.l.b16 %v560
      %v702 = vunpack.c.h.b16 %v560
      %v703 = vunpack.c.l.b16 %v561
      %v704 = vunpack.c.h.b16 %v561
      %v705 = vunpack.c.l.b16 %v562
      %v706 = vunpack.c.h.b16 %v562
      %v707 = vunpack.c.l.b16 %v563
      %v708 = vunpack.c.h.b16 %v563
      %v709 = vunpack.c.l.b16 %v564
      %v710 = vunpack.c.h.b16 %v564
      %v711 = vunpack.c.l.b16 %v565
      %v712 = vunpack.c.h.b16 %v565
      %v713 = vunpack.c.l.b16 %v566
      %v714 = vunpack.c.h.b16 %v566
      %v715 = vunpack.c.l.b16 %v567
      %v716 = vunpack.c.h.b16 %v567
      %v717 = vunpack.c.l.b16 %v568
      %v718 = vunpack.c.h.b16 %v568
      %v719 = vunpack.c.l.b16 %v569
      %v720 = vunpack.c.h.b16 %v569
      %v721 = vunpack.c.l.b16 %v570
      %v722 = vunpack.c.h.b16 %v570
      %v723 = vunpack.c.l.b16 %v571
      %v724 = vunpack.c.h.b16 %v571
      %v725 = vunpack.c.l.b16 %v572
      %v726 = vunpack.c.h.b16 %v572
      %v727 = vunpack.c.l.b16 %v573
      %v728 = vunpack.c.h.b16 %v573
      %v729 = vunpack.c.l.b16 %v574
      %v730 = vunpack.c.h.b16 %v574
      %v731 = vunpack.c.l.b16 %v575
      %v732 = vunpack.c.h.b16 %v575
      %v733 = vunpack.c.l.b16 %v576
      %v734 = vunpack.c.h.b16 %v576
      %v735 = vunpack.c.l.b16 %v577
      %v736 = vunpack.c.h.b16 %v577
      %v737 = vunpack.c.l.b16 %v578
      %v738 = vunpack.c.h.b16 %v578
      %v739 = vunpack.c.l.b16 %v579
      %v740 = vunpack.c.h.b16 %v579
      %v741 = vunpack.c.l.b16 %v580
      %v742 = vunpack.c.h.b16 %v580
      %v743 = vpack.c.b16 %v673, %v671
      %v744 = vpack.c.b16 %v674, %v672
      %v745 = vpack.c.b16 %v677, %v675
      %v746 = vpack.c.b16 %v678, %v676
      %v747 = vpack.c.b16 %v681, %v679
      %v748 = vpack.c.b16 %v682, %v680
      %v749 = vpack.c.b16 %v685, %v683
      %v750 = vpack.c.b16 %v686, %v684
      %v751 = vpack.c.b16 %v689, %v687
      %v752 = vpack.c.b16 %v690, %v688
      %v753 = vpack.c.b16 %v693, %v691
      %v754 = vpack.c.b16 %v694, %v692
      %v755 = vpack.c.b16 %v697, %v695
      %v756 = vpack.c.b16 %v698, %v696
      %v757 = vpack.c.b16 %v701, %v699
      %v758 = vpack.c.b16 %v702, %v700
      %v759 = vpack.c.b16 %v705, %v703
      %v760 = vpack.c.b16 %v706, %v704
      %v761 = vpack.c.b16 %v709, %v707
      %v762 = vpack.c.b16 %v710, %v708
      %v763 = vpack.c.b16 %v713, %v711
      %v764 = vpack.c.b16 %v714, %v712
      %v765 = vpack.c.b16 %v717, %v715
      %v766 = vpack.c.b16 %v718, %v716
      %v767 = vpack.c.b16 %v721, %v719
      %v768 = vpack.c.b16 %v722, %v720
      %v769 = vpack.c.b16 %v725, %v723
      %v770 = vpack.c.b16 %v726, %v724
      %v771 = vpack.c.b16 %v729, %v727
      %v772 = vpack.c.b16 %v730, %v728
      %v773 = vpack.c.b16 %v733, %v731
      %v774 = vpack.c.b16 %v734, %v732
      %v775 = vpack.c.b16 %v737, %v735
      %v776 = vpack.c.b16 %v738, %v736
      %v777 = vpack.c.b16 %v741, %v739
      %v778 = vpack.c.b16 %v742, %v740
      %vm815 = vcmask 261120
      %v817 = vsel %vm815, %v627, 0
      %v820 = vsel %vm815, %v630, 0
      %822 = vmatprep.subr.bf16.mxu0 %v758
      %823 = vmatpush1.bf16.msra.mxu0 %v757
      %824 = vmatprep.subr.bf16.mxu0 %v756
      %825 = vmatpush1.bf16.msra.mxu0 %v755
      %826 = vmatprep.subr.bf16.mxu0 %v754
      %827 = vmatpush1.bf16.msra.mxu0 %v753
      %828 = vmatprep.subr.bf16.mxu0 %v752
      %829 = vmatpush1.bf16.msra.mxu0 %v751
      %830 = vmatprep.subr.bf16.mxu0 %v750
      %831 = vmatpush1.bf16.msra.mxu0 %v749
      %832 = vmatprep.subr.bf16.mxu0 %v748
      %833 = vmatpush1.bf16.msra.mxu0 %v747
      %834 = vmatprep.subr.bf16.mxu0 %v746
      %835 = vmatpush1.bf16.msra.mxu0 %v745
      %836 = vmatprep.subr.bf16.mxu0 %v744
      %837 = vmatpush1.bf16.msra.mxu0 %v743
      %838 = vmatprep.subr.bf16.mxu0 %v774
      %839 = vmatpush2.bf16.msra.mxu0 %v773
      %840 = vmatprep.subr.bf16.mxu0 %v772
      %841 = vmatpush2.bf16.msra.mxu0 %v771
      %842 = vmatprep.subr.bf16.mxu0 %v770
      %843 = vmatpush2.bf16.msra.mxu0 %v769
      %844 = vmatprep.subr.bf16.mxu0 %v768
      %845 = vmatpush2.bf16.msra.mxu0 %v767
      %846 = vmatprep.subr.bf16.mxu0 %v766
      %847 = vmatpush2.bf16.msra.mxu0 %v765
      %848 = vmatprep.subr.bf16.mxu0 %v764
      %849 = vmatpush2.bf16.msra.mxu0 %v763
      %850 = vmatprep.subr.bf16.mxu0 %v762
      %851 = vmatpush2.bf16.msra.mxu0 %v761
      %852 = vmatprep.subr.bf16.mxu0 %v760
      %853 = vmatpush2.bf16.msra.mxu0 %v759
      %854 = vmatprep.mubr.bf16.mxu0 %v626
      %855 = vmatmul.mubr.bf16.gmra.mxu0 %v625
      %v856 = vpop.f32.mrf.mxu0
      %v857 = vadd.f32 %v588, %v856
      %v858 = vpop.f32.mrf.mxu0
      %v859 = vadd.f32 %v588, %v858
      %v860 = vpop.f32.mrf.mxu0
      %v861 = vadd.f32 %v593, %v860
      %v862 = vpop.f32.mrf.mxu0
      %v863 = vadd.f32 %v593, %v862
      %864 = vmatprep.mubr.bf16.mxu0 %v629
      %865 = vmatmul.mubr.bf16.gmra.mxu0 %v628
      %v866 = vpop.f32.mrf.mxu0
      %v867 = vadd.f32 %v598, %v866
      %v868 = vpop.f32.mrf.mxu0
      %v869 = vadd.f32 %v598, %v868
      %v870 = vpop.f32.mrf.mxu0
      %v871 = vadd.f32 %v603, %v870
      %v872 = vpop.f32.mrf.mxu0
      %v873 = vadd.f32 %v603, %v872
      %874 = vdwg.mxu0
      %875 = vmatprep.subr.bf16.mxu0 0
      %876 = vmatpush1.bf16.msra.mxu0 0
      %877 = vmatprep.subr.bf16.mxu0 0
      %878 = vmatpush1.bf16.msra.mxu0 0
      %879 = vmatprep.subr.bf16.mxu0 0
      %880 = vmatpush1.bf16.msra.mxu0 0
      %881 = vmatprep.subr.bf16.mxu0 0
      %882 = vmatpush1.bf16.msra.mxu0 0
      %883 = vmatprep.subr.bf16.mxu0 0
      %884 = vmatpush1.bf16.msra.mxu0 0
      %885 = vmatprep.subr.bf16.mxu0 0
      %886 = vmatpush1.bf16.msra.mxu0 0
      %887 = vmatprep.subr.bf16.mxu0 %v778
      %888 = vmatpush1.bf16.msra.mxu0 %v777
      %889 = vmatprep.subr.bf16.mxu0 %v776
      %890 = vmatpush1.bf16.msra.mxu0 %v775
      %891 = vmatprep.subr.bf16.mxu0 0
      %892 = vmatpush2.bf16.msra.mxu0 0
      %893 = vmatprep.subr.bf16.mxu0 0
      %894 = vmatpush2.bf16.msra.mxu0 0
      %895 = vmatprep.subr.bf16.mxu0 0
      %896 = vmatpush2.bf16.msra.mxu0 0
      %897 = vmatprep.subr.bf16.mxu0 0
      %898 = vmatpush2.bf16.msra.mxu0 0
      %899 = vmatprep.subr.bf16.mxu0 0
      %900 = vmatpush2.bf16.msra.mxu0 0
      %901 = vmatprep.subr.bf16.mxu0 0
      %902 = vmatpush2.bf16.msra.mxu0 0
      %903 = vmatprep.subr.bf16.mxu0 0
      %904 = vmatpush2.bf16.msra.mxu0 0
      %905 = vmatprep.subr.bf16.mxu0 0
      %906 = vmatpush2.bf16.msra.mxu0 0
      %907 = vmatprep.mubr.bf16.mxu0 0
      %908 = vmatmul.mubr.bf16.gmra.mxu0 %v817
      %v909 = vpop.f32.mrf.mxu0
      %v910 = vadd.f32 %v857, %v909
      %v911 = vpop.f32.mrf.mxu0
      %v912 = vadd.f32 %v859, %v911
      %v913 = vpop.f32.mrf.mxu0
      %v914 = vadd.f32 %v861, %v913
      %v915 = vpop.f32.mrf.mxu0
      %v916 = vadd.f32 %v863, %v915
      %917 = vmatprep.mubr.bf16.mxu0 0
      %918 = vmatmul.mubr.bf16.gmra.mxu0 %v820
      %v919 = vpop.f32.mrf.mxu0
      %v920 = vadd.f32 %v867, %v919
      %v921 = vpop.f32.mrf.mxu0
      %v922 = vadd.f32 %v869, %v921
      %v923 = vpop.f32.mrf.mxu0
      %v924 = vadd.f32 %v871, %v923
      %v925 = vpop.f32.mrf.mxu0
      %v926 = vadd.f32 %v873, %v925
      %927 = vdwg.mxu0
      %v928 = vmax.f32 %v910, 0.0
      %v929 = vmax.f32 %v912, 0.0
      %v930 = vmax.f32 %v914, 0.0
      %v931 = vmax.f32 %v916, 0.0
      %v932 = vmax.f32 %v920, 0.0
      %v933 = vmax.f32 %v922, 0.0
      %v934 = vmax.f32 %v924, 0.0
      %v935 = vmax.f32 %v926, 0.0
      %v936 = vld [vmem:[%s4] sm:$0xf]
      %v937 = vpack.c.bf16 %v930, %v928
      %v938 = vpack.c.bf16 %v931, %v929
      %v939 = vpack.c.bf16 %v934, %v932
      %v940 = vpack.c.bf16 %v935, %v933
      %v941 = vld [vmem:[%s5] sm:$0xff]
      %943 = vset.pattern.permute.xlu0 0
      %944 = vperm.xlu0 %943, %v941
      %v945 = vpop.permute.xlu0 %944
      %v948 = vsel %vm815, %v936, 0
      %950 = vmatprep.subr.bf16.mxu0 0
      %951 = vmatpush1.bf16.msra.mxu0 0
      %952 = vmatprep.subr.bf16.mxu0 0
      %953 = vmatpush1.bf16.msra.mxu0 0
      %954 = vmatprep.subr.bf16.mxu0 0
      %955 = vmatpush1.bf16.msra.mxu0 0
      %956 = vmatprep.subr.bf16.mxu0 0
      %957 = vmatpush1.bf16.msra.mxu0 0
      %958 = vmatprep.subr.bf16.mxu0 0
      %959 = vmatpush1.bf16.msra.mxu0 0
      %960 = vmatprep.subr.bf16.mxu0 0
      %961 = vmatpush1.bf16.msra.mxu0 0
      %962 = vmatprep.subr.bf16.mxu0 %v940
      %963 = vmatpush1.bf16.msra.mxu0 %v939
      %964 = vmatprep.subr.bf16.mxu0 %v938
      %965 = vmatpush1.bf16.msra.mxu0 %v937
      %966 = vmatprep.subr.bf16.mxu0 0
      %967 = vmatpush2.bf16.msra.mxu0 0
      %968 = vmatprep.subr.bf16.mxu0 0
      %969 = vmatpush2.bf16.msra.mxu0 0
      %970 = vmatprep.subr.bf16.mxu0 0
      %971 = vmatpush2.bf16.msra.mxu0 0
      %972 = vmatprep.subr.bf16.mxu0 0
      %973 = vmatpush2.bf16.msra.mxu0 0
      %974 = vmatprep.subr.bf16.mxu0 0
      %975 = vmatpush2.bf16.msra.mxu0 0
      %976 = vmatprep.subr.bf16.mxu0 0
      %977 = vmatpush2.bf16.msra.mxu0 0
      %978 = vmatprep.subr.bf16.mxu0 0
      %979 = vmatpush2.bf16.msra.mxu0 0
      %980 = vmatprep.subr.bf16.mxu0 0
      %981 = vmatpush2.bf16.msra.mxu0 0
      %982 = vmatprep.mubr.bf16.mxu0 0
      %983 = vmatmul.mubr.bf16.gmra.mxu0 %v948
      %v984 = vpop.f32.mrf.mxu0
      %v985 = vadd.f32 %v945, %v984
      %v986 = vpop.f32.mrf.mxu0
      %v987 = vadd.f32 %v945, %v986
      %v988 = vpop.f32.mrf.mxu0
      %v989 = vpop.f32.mrf.mxu0
      %990 = vdwg.mxu0
      %991 = vst [vmem:[%s514] sm:$0xff] %v985
      %992 = vst [vmem:[%s514 + $0x8] sm:$0xff] %v987
      %v993 = vld [vmem:[%s6] sm:$0xff]
      %v994 = vld [vmem:[%s6 + $0x8] sm:$0xf]
      %v995 = vld [vmem:[%s6 + $0xc] sm:$0xff]
      %v996 = vld [vmem:[%s6 + $0x14] sm:$0xf]
      %v997 = vld [vmem:[%s6 + $0x18] sm:$0xff]
      %v998 = vld [vmem:[%s6 + $0x20] sm:$0xf]
      %v999 = vld [vmem:[%s6 + $0x24] sm:$0xff]
      %v1000 = vld [vmem:[%s6 + $0x2c] sm:$0xf]
      %v1001 = vld [vmem:[%s504] sm:$0xff]
      %v1002 = vld [vmem:[%s504 + $0x8] sm:$0xff]
      %v1003 = vld [vmem:[%s504 + $0x10] sm:$0xff]
      %v1004 = vld [vmem:[%s504 + $0x18] sm:$0xff]
      %v1005 = vld [vmem:[%s504 + $0x20] sm:$0xff]
      %v1006 = vld [vmem:[%s504 + $0x28] sm:$0xff]
      %v1007 = vld [vmem:[%s504 + $0x30] sm:$0xff]
      %v1008 = vld [vmem:[%s504 + $0x38] sm:$0xff]
      %v1009 = vld [vmem:[%s504 + $0x40] sm:$0xff]
      %v1010 = vld [vmem:[%s504 + $0x48] sm:$0xff]
      %v1011 = vld [vmem:[%s504 + $0x50] sm:$0xff]
      %v1012 = vld [vmem:[%s504 + $0x58] sm:$0xff]
      %v1013 = vld [vmem:[%s504 + $0x60] sm:$0xff]
      %v1014 = vld [vmem:[%s504 + $0x68] sm:$0xff]
      %v1015 = vld [vmem:[%s504 + $0x70] sm:$0xff]
      %v1016 = vld [vmem:[%s504 + $0x78] sm:$0xff]
      %v1017 = vld [vmem:[%s504 + $0x80] sm:$0xff]
      %v1018 = vld [vmem:[%s504 + $0x88] sm:$0xff]
      %v1019 = vld [vmem:[%s504 + $0x90] sm:$0xff]
      %v1020 = vld [vmem:[%s504 + $0x98] sm:$0xff]
      %v1021 = vld [vmem:[%s504 + $0xa0] sm:$0xff]
      %v1022 = vld [vmem:[%s504 + $0xa8] sm:$0xff]
      %v1023 = vld [vmem:[%s504 + $0xb0] sm:$0xff]
      %v1024 = vld [vmem:[%s504 + $0xb8] sm:$0xff]
      %v1025 = vld [vmem:[%s504 + $0xc0] sm:$0xff]
      %v1026 = vld [vmem:[%s504 + $0xc8] sm:$0xff]
      %v1027 = vld [vmem:[%s504 + $0xd0] sm:$0xff]
      %v1028 = vld [vmem:[%s504 + $0xd8] sm:$0xff]
      %v1029 = vld [vmem:[%s504 + $0xe0] sm:$0xff]
      %v1030 = vld [vmem:[%s504 + $0xe8] sm:$0xff]
      %v1031 = vld [vmem:[%s504 + $0xf0] sm:$0xff]
      %v1032 = vld [vmem:[%s504 + $0xf8] sm:$0xff]
      %v1033 = vld [vmem:[%s504 + $0x100] sm:$0xff]
      %v1034 = vld [vmem:[%s504 + $0x108] sm:$0xff]
      %v1035 = vld [vmem:[%s504 + $0x110] sm:$0xff]
      %v1036 = vld [vmem:[%s504 + $0x118] sm:$0xff]
      %v1037 = vld [vmem:[%s7] sm:$0xff]
      %v1038 = vld [vmem:[%s7 + $0x8] sm:$0xff]
      %v1039 = vld [vmem:[%s7 + $0x10] sm:$0xff]
      %v1040 = vld [vmem:[%s7 + $0x18] sm:$0xff]
      %1042 = vset.pattern.permute.xlu0 0
      %1043 = vperm.xlu0 %1042, %v1037
      %v1044 = vpop.permute.xlu0 %1043
      %1047 = vset.pattern.permute.xlu0 0
      %1048 = vperm.xlu0 %1047, %v1038
      %v1049 = vpop.permute.xlu0 %1048
      %1052 = vset.pattern.permute.xlu0 0
      %1053 = vperm.xlu0 %1052, %v1039
      %v1054 = vpop.permute.xlu0 %1053
      %1057 = vset.pattern.permute.xlu0 0
      %1058 = vperm.xlu0 %1057, %v1040
      %v1059 = vpop.permute.xlu0 %1058
      %v1069 = vunpack.c.l.b16 %v993
      %v1070 = vunpack.c.h.b16 %v993
      %v1071 = vunpack.c.l.b16 %v994
      %v1072 = vunpack.c.l.b16 %v995
      %v1073 = vunpack.c.h.b16 %v995
      %v1074 = vunpack.c.l.b16 %v996
      %v1075 = vunpack.c.l.b16 %v997
      %v1076 = vunpack.c.h.b16 %v997
      %v1077 = vunpack.c.l.b16 %v998
      %v1078 = vunpack.c.l.b16 %v999
      %v1079 = vunpack.c.h.b16 %v999
      %v1080 = vunpack.c.l.b16 %v1000
      %v1081 = vpack.c.b16 %v1072, %v1069
      %v1082 = vpack.c.b16 %v1073, %v1070
      %v1083 = vpack.c.b16 %v1074, %v1071
      %v1084 = vpack.c.b16 %v1078, %v1075
      %v1085 = vpack.c.b16 %v1079, %v1076
      %v1086 = vpack.c.b16 %v1080, %v1077
      %v1127 = vunpack.c.l.b16 %v1001
      %v1128 = vunpack.c.h.b16 %v1001
      %v1129 = vunpack.c.l.b16 %v1002
      %v1130 = vunpack.c.h.b16 %v1002
      %v1131 = vunpack.c.l.b16 %v1003
      %v1132 = vunpack.c.h.b16 %v1003
      %v1133 = vunpack.c.l.b16 %v1004
      %v1134 = vunpack.c.h.b16 %v1004
      %v1135 = vunpack.c.l.b16 %v1005
      %v1136 = vunpack.c.h.b16 %v1005
      %v1137 = vunpack.c.l.b16 %v1006
      %v1138 = vunpack.c.h.b16 %v1006
      %v1139 = vunpack.c.l.b16 %v1007
      %v1140 = vunpack.c.h.b16 %v1007
      %v1141 = vunpack.c.l.b16 %v1008
      %v1142 = vunpack.c.h.b16 %v1008
      %v1143 = vunpack.c.l.b16 %v1009
      %v1144 = vunpack.c.h.b16 %v1009
      %v1145 = vunpack.c.l.b16 %v1010
      %v1146 = vunpack.c.h.b16 %v1010
      %v1147 = vunpack.c.l.b16 %v1011
      %v1148 = vunpack.c.h.b16 %v1011
      %v1149 = vunpack.c.l.b16 %v1012
      %v1150 = vunpack.c.h.b16 %v1012
      %v1151 = vunpack.c.l.b16 %v1013
      %v1152 = vunpack.c.h.b16 %v1013
      %v1153 = vunpack.c.l.b16 %v1014
      %v1154 = vunpack.c.h.b16 %v1014
      %v1155 = vunpack.c.l.b16 %v1015
      %v1156 = vunpack.c.h.b16 %v1015
      %v1157 = vunpack.c.l.b16 %v1016
      %v1158 = vunpack.c.h.b16 %v1016
      %v1159 = vunpack.c.l.b16 %v1017
      %v1160 = vunpack.c.h.b16 %v1017
      %v1161 = vunpack.c.l.b16 %v1018
      %v1162 = vunpack.c.h.b16 %v1018
      %v1163 = vunpack.c.l.b16 %v1019
      %v1164 = vunpack.c.h.b16 %v1019
      %v1165 = vunpack.c.l.b16 %v1020
      %v1166 = vunpack.c.h.b16 %v1020
      %v1167 = vunpack.c.l.b16 %v1021
      %v1168 = vunpack.c.h.b16 %v1021
      %v1169 = vunpack.c.l.b16 %v1022
      %v1170 = vunpack.c.h.b16 %v1022
      %v1171 = vunpack.c.l.b16 %v1023
      %v1172 = vunpack.c.h.b16 %v1023
      %v1173 = vunpack.c.l.b16 %v1024
      %v1174 = vunpack.c.h.b16 %v1024
      %v1175 = vunpack.c.l.b16 %v1025
      %v1176 = vunpack.c.h.b16 %v1025
      %v1177 = vunpack.c.l.b16 %v1026
      %v1178 = vunpack.c.h.b16 %v1026
      %v1179 = vunpack.c.l.b16 %v1027
      %v1180 = vunpack.c.h.b16 %v1027
      %v1181 = vunpack.c.l.b16 %v1028
      %v1182 = vunpack.c.h.b16 %v1028
      %v1183 = vunpack.c.l.b16 %v1029
      %v1184 = vunpack.c.h.b16 %v1029
      %v1185 = vunpack.c.l.b16 %v1030
      %v1186 = vunpack.c.h.b16 %v1030
      %v1187 = vunpack.c.l.b16 %v1031
      %v1188 = vunpack.c.h.b16 %v1031
      %v1189 = vunpack.c.l.b16 %v1032
      %v1190 = vunpack.c.h.b16 %v1032
      %v1191 = vunpack.c.l.b16 %v1033
      %v1192 = vunpack.c.h.b16 %v1033
      %v1193 = vunpack.c.l.b16 %v1034
      %v1194 = vunpack.c.h.b16 %v1034
      %v1195 = vunpack.c.l.b16 %v1035
      %v1196 = vunpack.c.h.b16 %v1035
      %v1197 = vunpack.c.l.b16 %v1036
      %v1198 = vunpack.c.h.b16 %v1036
      %v1199 = vpack.c.b16 %v1129, %v1127
      %v1200 = vpack.c.b16 %v1130, %v1128
      %v1201 = vpack.c.b16 %v1133, %v1131
      %v1202 = vpack.c.b16 %v1134, %v1132
      %v1203 = vpack.c.b16 %v1137, %v1135
      %v1204 = vpack.c.b16 %v1138, %v1136
      %v1205 = vpack.c.b16 %v1141, %v1139
      %v1206 = vpack.c.b16 %v1142, %v1140
      %v1207 = vpack.c.b16 %v1145, %v1143
      %v1208 = vpack.c.b16 %v1146, %v1144
      %v1209 = vpack.c.b16 %v1149, %v1147
      %v1210 = vpack.c.b16 %v1150, %v1148
      %v1211 = vpack.c.b16 %v1153, %v1151
      %v1212 = vpack.c.b16 %v1154, %v1152
      %v1213 = vpack.c.b16 %v1157, %v1155
      %v1214 = vpack.c.b16 %v1158, %v1156
      %v1215 = vpack.c.b16 %v1161, %v1159
      %v1216 = vpack.c.b16 %v1162, %v1160
      %v1217 = vpack.c.b16 %v1165, %v1163
      %v1218 = vpack.c.b16 %v1166, %v1164
      %v1219 = vpack.c.b16 %v1169, %v1167
      %v1220 = vpack.c.b16 %v1170, %v1168
      %v1221 = vpack.c.b16 %v1173, %v1171
      %v1222 = vpack.c.b16 %v1174, %v1172
      %v1223 = vpack.c.b16 %v1177, %v1175
      %v1224 = vpack.c.b16 %v1178, %v1176
      %v1225 = vpack.c.b16 %v1181, %v1179
      %v1226 = vpack.c.b16 %v1182, %v1180
      %v1227 = vpack.c.b16 %v1185, %v1183
      %v1228 = vpack.c.b16 %v1186, %v1184
      %v1229 = vpack.c.b16 %v1189, %v1187
      %v1230 = vpack.c.b16 %v1190, %v1188
      %v1231 = vpack.c.b16 %v1193, %v1191
      %v1232 = vpack.c.b16 %v1194, %v1192
      %v1233 = vpack.c.b16 %v1197, %v1195
      %v1234 = vpack.c.b16 %v1198, %v1196
      %v1272 = vsel %vm815, %v1083, 0
      %v1275 = vsel %vm815, %v1086, 0
      %1277 = vmatprep.subr.bf16.mxu0 %v1214
      %1278 = vmatpush1.bf16.msra.mxu0 %v1213
      %1279 = vmatprep.subr.bf16.mxu0 %v1212
      %1280 = vmatpush1.bf16.msra.mxu0 %v1211
      %1281 = vmatprep.subr.bf16.mxu0 %v1210
      %1282 = vmatpush1.bf16.msra.mxu0 %v1209
      %1283 = vmatprep.subr.bf16.mxu0 %v1208
      %1284 = vmatpush1.bf16.msra.mxu0 %v1207
      %1285 = vmatprep.subr.bf16.mxu0 %v1206
      %1286 = vmatpush1.bf16.msra.mxu0 %v1205
      %1287 = vmatprep.subr.bf16.mxu0 %v1204
      %1288 = vmatpush1.bf16.msra.mxu0 %v1203
      %1289 = vmatprep.subr.bf16.mxu0 %v1202
      %1290 = vmatpush1.bf16.msra.mxu0 %v1201
      %1291 = vmatprep.subr.bf16.mxu0 %v1200
      %1292 = vmatpush1.bf16.msra.mxu0 %v1199
      %1293 = vmatprep.subr.bf16.mxu0 %v1230
      %1294 = vmatpush2.bf16.msra.mxu0 %v1229
      %1295 = vmatprep.subr.bf16.mxu0 %v1228
      %1296 = vmatpush2.bf16.msra.mxu0 %v1227
      %1297 = vmatprep.subr.bf16.mxu0 %v1226
      %1298 = vmatpush2.bf16.msra.mxu0 %v1225
      %1299 = vmatprep.subr.bf16.mxu0 %v1224
      %1300 = vmatpush2.bf16.msra.mxu0 %v1223
      %1301 = vmatprep.subr.bf16.mxu0 %v1222
      %1302 = vmatpush2.bf16.msra.mxu0 %v1221
      %1303 = vmatprep.subr.bf16.mxu0 %v1220
      %1304 = vmatpush2.bf16.msra.mxu0 %v1219
      %1305 = vmatprep.subr.bf16.mxu0 %v1218
      %1306 = vmatpush2.bf16.msra.mxu0 %v1217
      %1307 = vmatprep.subr.bf16.mxu0 %v1216
      %1308 = vmatpush2.bf16.msra.mxu0 %v1215
      %1309 = vmatprep.mubr.bf16.mxu0 %v1082
      %1310 = vmatmul.mubr.bf16.gmra.mxu0 %v1081
      %v1311 = vpop.f32.mrf.mxu0
      %v1312 = vadd.f32 %v1044, %v1311
      %v1313 = vpop.f32.mrf.mxu0
      %v1314 = vadd.f32 %v1044, %v1313
      %v1315 = vpop.f32.mrf.mxu0
      %v1316 = vadd.f32 %v1049, %v1315
      %v1317 = vpop.f32.mrf.mxu0
      %v1318 = vadd.f32 %v1049, %v1317
      %1319 = vmatprep.mubr.bf16.mxu0 %v1085
      %1320 = vmatmul.mubr.bf16.gmra.mxu0 %v1084
      %v1321 = vpop.f32.mrf.mxu0
      %v1322 = vadd.f32 %v1054, %v1321
      %v1323 = vpop.f32.mrf.mxu0
      %v1324 = vadd.f32 %v1054, %v1323
      %v1325 = vpop.f32.mrf.mxu0
      %v1326 = vadd.f32 %v1059, %v1325
      %v1327 = vpop.f32.mrf.mxu0
      %v1328 = vadd.f32 %v1059, %v1327
      %1329 = vdwg.mxu0
      %1330 = vmatprep.subr.bf16.mxu0 0
      %1331 = vmatpush1.bf16.msra.mxu0 0
      %1332 = vmatprep.subr.bf16.mxu0 0
      %1333 = vmatpush1.bf16.msra.mxu0 0
      %1334 = vmatprep.subr.bf16.mxu0 0
      %1335 = vmatpush1.bf16.msra.mxu0 0
      %1336 = vmatprep.subr.bf16.mxu0 0
      %1337 = vmatpush1.bf16.msra.mxu0 0
      %1338 = vmatprep.subr.bf16.mxu0 0
      %1339 = vmatpush1.bf16.msra.mxu0 0
      %1340 = vmatprep.subr.bf16.mxu0 0
      %1341 = vmatpush1.bf16.msra.mxu0 0
      %1342 = vmatprep.subr.bf16.mxu0 %v1234
      %1343 = vmatpush1.bf16.msra.mxu0 %v1233
      %1344 = vmatprep.subr.bf16.mxu0 %v1232
      %1345 = vmatpush1.bf16.msra.mxu0 %v1231
      %1346 = vmatprep.subr.bf16.mxu0 0
      %1347 = vmatpush2.bf16.msra.mxu0 0
      %1348 = vmatprep.subr.bf16.mxu0 0
      %1349 = vmatpush2.bf16.msra.mxu0 0
      %1350 = vmatprep.subr.bf16.mxu0 0
      %1351 = vmatpush2.bf16.msra.mxu0 0
      %1352 = vmatprep.subr.bf16.mxu0 0
      %1353 = vmatpush2.bf16.msra.mxu0 0
      %1354 = vmatprep.subr.bf16.mxu0 0
      %1355 = vmatpush2.bf16.msra.mxu0 0
      %1356 = vmatprep.subr.bf16.mxu0 0
      %1357 = vmatpush2.bf16.msra.mxu0 0
      %1358 = vmatprep.subr.bf16.mxu0 0
      %1359 = vmatpush2.bf16.msra.mxu0 0
      %1360 = vmatprep.subr.bf16.mxu0 0
      %1361 = vmatpush2.bf16.msra.mxu0 0
      %1362 = vmatprep.mubr.bf16.mxu0 0
      %1363 = vmatmul.mubr.bf16.gmra.mxu0 %v1272
      %v1364 = vpop.f32.mrf.mxu0
      %v1365 = vadd.f32 %v1312, %v1364
      %v1366 = vpop.f32.mrf.mxu0
      %v1367 = vadd.f32 %v1314, %v1366
      %v1368 = vpop.f32.mrf.mxu0
      %v1369 = vadd.f32 %v1316, %v1368
      %v1370 = vpop.f32.mrf.mxu0
      %v1371 = vadd.f32 %v1318, %v1370
      %1372 = vmatprep.mubr.bf16.mxu0 0
      %1373 = vmatmul.mubr.bf16.gmra.mxu0 %v1275
      %v1374 = vpop.f32.mrf.mxu0
      %v1375 = vadd.f32 %v1322, %v1374
      %v1376 = vpop.f32.mrf.mxu0
      %v1377 = vadd.f32 %v1324, %v1376
      %v1378 = vpop.f32.mrf.mxu0
      %v1379 = vadd.f32 %v1326, %v1378
      %v1380 = vpop.f32.mrf.mxu0
      %v1381 = vadd.f32 %v1328, %v1380
      %1382 = vdwg.mxu0
      %v1383 = vmax.f32 %v1365, 0.0
      %v1384 = vmax.f32 %v1367, 0.0
      %v1385 = vmax.f32 %v1369, 0.0
      %v1386 = vmax.f32 %v1371, 0.0
      %v1387 = vmax.f32 %v1375, 0.0
      %v1388 = vmax.f32 %v1377, 0.0
      %v1389 = vmax.f32 %v1379, 0.0
      %v1390 = vmax.f32 %v1381, 0.0
      %v1391 = vld [vmem:[%s8] sm:$0xf]
      %v1392 = vld [vmem:[%s8 + $0x4] sm:$0xf]
      %v1393 = vld [vmem:[%s8 + $0x8] sm:$0xf]
      %v1394 = vld [vmem:[%s8 + $0xc] sm:$0xf]
      %v1395 = vld [vmem:[%s8 + $0x10] sm:$0x1]
      %v1396 = vpack.c.bf16 %v1385, %v1383
      %v1397 = vpack.c.bf16 %v1386, %v1384
      %v1398 = vpack.c.bf16 %v1389, %v1387
      %v1399 = vpack.c.bf16 %v1390, %v1388
      %v1400 = vld [vmem:[%s9] sm:$0xff]
      %v1401 = vld [vmem:[%s9 + $0x8] sm:$0xff]
      %v1402 = vld [vmem:[%s9 + $0x10] sm:$0xff]
      %v1403 = vld [vmem:[%s9 + $0x18] sm:$0xff]
      %v1404 = vld [vmem:[%s9 + $0x20] sm:$0x3]
      %1406 = vset.pattern.permute.xlu0 0
      %1407 = vperm.xlu0 %1406, %v1400
      %v1408 = vpop.permute.xlu0 %1407
      %1411 = vset.pattern.permute.xlu0 0
      %1412 = vperm.xlu0 %1411, %v1401
      %v1413 = vpop.permute.xlu0 %1412
      %1416 = vset.pattern.permute.xlu0 0
      %1417 = vperm.xlu0 %1416, %v1402
      %v1418 = vpop.permute.xlu0 %1417
      %1421 = vset.pattern.permute.xlu0 0
      %1422 = vperm.xlu0 %1421, %v1403
      %v1423 = vpop.permute.xlu0 %1422
      %1426 = vset.pattern.permute.xlu0 0
      %1427 = vperm.xlu0 %1426, %v1404
      %v1428 = vpop.permute.xlu0 %1427
      %v1435 = vunpack.c.l.b16 %v1391
      %v1436 = vunpack.c.l.b16 %v1392
      %v1437 = vunpack.c.l.b16 %v1393
      %v1438 = vunpack.c.l.b16 %v1394
      %v1439 = vunpack.c.l.b16 %v1395
      %v1440 = vpack.c.b16 %v1436, %v1435
      %v1441 = vpack.c.b16 %v1438, %v1437
      %v1442 = vpack.c.b16 %v1439, %v1439
      %v1444 = vsel %vm815, %v1440, 0
      %v1447 = vsel %vm815, %v1441, 0
      %v1450 = vsel %vm815, %v1442, 0
      %1452 = vmatprep.subr.bf16.mxu0 0
      %1453 = vmatpush1.bf16.msra.mxu0 0
      %1454 = vmatprep.subr.bf16.mxu0 0
      %1455 = vmatpush1.bf16.msra.mxu0 0
      %1456 = vmatprep.subr.bf16.mxu0 0
      %1457 = vmatpush1.bf16.msra.mxu0 0
      %1458 = vmatprep.subr.bf16.mxu0 0
      %1459 = vmatpush1.bf16.msra.mxu0 0
      %1460 = vmatprep.subr.bf16.mxu0 0
      %1461 = vmatpush1.bf16.msra.mxu0 0
      %1462 = vmatprep.subr.bf16.mxu0 0
      %1463 = vmatpush1.bf16.msra.mxu0 0
      %1464 = vmatprep.subr.bf16.mxu0 %v1399
      %1465 = vmatpush1.bf16.msra.mxu0 %v1398
      %1466 = vmatprep.subr.bf16.mxu0 %v1397
      %1467 = vmatpush1.bf16.msra.mxu0 %v1396
      %1468 = vmatprep.subr.bf16.mxu0 0
      %1469 = vmatpush2.bf16.msra.mxu0 0
      %1470 = vmatprep.subr.bf16.mxu0 0
      %1471 = vmatpush2.bf16.msra.mxu0 0
      %1472 = vmatprep.subr.bf16.mxu0 0
      %1473 = vmatpush2.bf16.msra.mxu0 0
      %1474 = vmatprep.subr.bf16.mxu0 0
      %1475 = vmatpush2.bf16.msra.mxu0 0
      %1476 = vmatprep.subr.bf16.mxu0 0
      %1477 = vmatpush2.bf16.msra.mxu0 0
      %1478 = vmatprep.subr.bf16.mxu0 0
      %1479 = vmatpush2.bf16.msra.mxu0 0
      %1480 = vmatprep.subr.bf16.mxu0 0
      %1481 = vmatpush2.bf16.msra.mxu0 0
      %1482 = vmatprep.subr.bf16.mxu0 0
      %1483 = vmatpush2.bf16.msra.mxu0 0
      %1484 = vmatprep.mubr.bf16.mxu0 0
      %1485 = vmatmul.mubr.bf16.gmra.mxu0 %v1444
      %v1486 = vpop.f32.mrf.mxu0
      %v1487 = vadd.f32 %v1408, %v1486
      %v1488 = vpop.f32.mrf.mxu0
      %v1489 = vadd.f32 %v1408, %v1488
      %v1490 = vpop.f32.mrf.mxu0
      %v1491 = vadd.f32 %v1413, %v1490
      %v1492 = vpop.f32.mrf.mxu0
      %v1493 = vadd.f32 %v1413, %v1492
      %1494 = vmatprep.mubr.bf16.mxu0 0
      %1495 = vmatmul.mubr.bf16.gmra.mxu0 %v1447
      %v1496 = vpop.f32.mrf.mxu0
      %v1497 = vadd.f32 %v1418, %v1496
      %v1498 = vpop.f32.mrf.mxu0
      %v1499 = vadd.f32 %v1418, %v1498
      %v1500 = vpop.f32.mrf.mxu0
      %v1501 = vadd.f32 %v1423, %v1500
      %v1502 = vpop.f32.mrf.mxu0
      %v1503 = vadd.f32 %v1423, %v1502
      %1504 = vmatprep.mubr.bf16.mxu0 0
      %1505 = vmatmul.mubr.bf16.gmra.mxu0 %v1450
      %v1506 = vpop.f32.mrf.mxu0
      %v1507 = vadd.f32 %v1428, %v1506
      %v1508 = vpop.f32.mrf.mxu0
      %v1509 = vadd.f32 %v1428, %v1508
      %v1510 = vpop.f32.mrf.mxu0
      %v1511 = vpop.f32.mrf.mxu0
      %1512 = vdwg.mxu0
      %1513 = vst [vmem:[%s524] sm:$0xff] %v1487
      %1514 = vst [vmem:[%s524 + $0x8] sm:$0xff] %v1489
      %1515 = vst [vmem:[%s524 + $0x10] sm:$0xff] %v1491
      %1516 = vst [vmem:[%s524 + $0x18] sm:$0xff] %v1493
      %1517 = vst [vmem:[%s524 + $0x20] sm:$0xff] %v1497
      %1518 = vst [vmem:[%s524 + $0x28] sm:$0xff] %v1499
      %1519 = vst [vmem:[%s524 + $0x30] sm:$0xff] %v1501
      %1520 = vst [vmem:[%s524 + $0x38] sm:$0xff] %v1503
      %1521 = vst [vmem:[%s524 + $0x40] sm:$0x3] %v1507
      %1522 = vst [vmem:[%s524 + $0x48] sm:$0x3] %v1509
      %v1525 = vrot.slane %v1487, 2
      %v1526 = vrot.slane %v1489, 2
      %v1529 = vmin.f32 %v1487, %v1525
      %v1530 = vmin.f32 %v1489, %v1526
      %v1531 = vmax.f32 %v1487, %v1525
      %v1532 = vmax.f32 %v1489, %v1526
      %v1533 = vrot.slane %v1487, 4
      %v1534 = vrot.slane %v1489, 4
      %v1537 = vmin.f32 %v1529, %v1533
      %v1538 = vmin.f32 %v1530, %v1534
      %v1539 = vmax.f32 %v1531, %v1533
      %v1540 = vmax.f32 %v1532, %v1534
      %v1541 = vrot.slane %v1487, 6
      %v1542 = vrot.slane %v1489, 6
      %v1545 = vmin.f32 %v1537, %v1541
      %v1546 = vmin.f32 %v1538, %v1542
      %v1547 = vmax.f32 %v1539, %v1541
      %v1548 = vmax.f32 %v1540, %v1542
      %v1549 = vmin.f32 %v1545, %v1491
      %v1550 = vmin.f32 %v1546, %v1493
      %v1551 = vmax.f32 %v1547, %v1491
      %v1552 = vmax.f32 %v1548, %v1493
      %v1555 = vrot.slane %v1491, 2
      %v1556 = vrot.slane %v1493, 2
      %v1559 = vmin.f32 %v1549, %v1555
      %v1560 = vmin.f32 %v1550, %v1556
      %v1561 = vmax.f32 %v1551, %v1555
      %v1562 = vmax.f32 %v1552, %v1556
      %v1563 = vrot.slane %v1491, 4
      %v1564 = vrot.slane %v1493, 4
      %v1567 = vmin.f32 %v1559, %v1563
      %v1568 = vmin.f32 %v1560, %v1564
      %v1569 = vmax.f32 %v1561, %v1563
      %v1570 = vmax.f32 %v1562, %v1564
      %v1571 = vrot.slane %v1491, 6
      %v1572 = vrot.slane %v1493, 6
      %v1575 = vmin.f32 %v1567, %v1571
      %v1576 = vmin.f32 %v1568, %v1572
      %v1577 = vmax.f32 %v1569, %v1571
      %v1578 = vmax.f32 %v1570, %v1572
      %v1579 = vmin.f32 %v1575, %v1497
      %v1580 = vmin.f32 %v1576, %v1499
      %v1581 = vmax.f32 %v1577, %v1497
      %v1582 = vmax.f32 %v1578, %v1499
      %v1585 = vrot.slane %v1497, 2
      %v1586 = vrot.slane %v1499, 2
      %v1589 = vmin.f32 %v1579, %v1585
      %v1590 = vmin.f32 %v1580, %v1586
      %v1591 = vmax.f32 %v1581, %v1585
      %v1592 = vmax.f32 %v1582, %v1586
      %v1593 = vrot.slane %v1497, 4
      %v1594 = vrot.slane %v1499, 4
      %v1597 = vmin.f32 %v1589, %v1593
      %v1598 = vmin.f32 %v1590, %v1594
      %v1599 = vmax.f32 %v1591, %v1593
      %v1600 = vmax.f32 %v1592, %v1594
      %v1601 = vrot.slane %v1497, 6
      %v1602 = vrot.slane %v1499, 6
      %v1605 = vmin.f32 %v1597, %v1601
      %v1606 = vmin.f32 %v1598, %v1602
      %v1607 = vmax.f32 %v1599, %v1601
      %v1608 = vmax.f32 %v1600, %v1602
      %v1609 = vmin.f32 %v1605, %v1501
      %v1610 = vmin.f32 %v1606, %v1503
      %v1611 = vmax.f32 %v1607, %v1501
      %v1612 = vmax.f32 %v1608, %v1503
      %v1615 = vrot.slane %v1501, 2
      %v1616 = vrot.slane %v1503, 2
      %v1619 = vmin.f32 %v1609, %v1615
      %v1620 = vmin.f32 %v1610, %v1616
      %v1621 = vmax.f32 %v1611, %v1615
      %v1622 = vmax.f32 %v1612, %v1616
      %v1623 = vrot.slane %v1501, 4
      %v1624 = vrot.slane %v1503, 4
      %v1627 = vmin.f32 %v1619, %v1623
      %v1628 = vmin.f32 %v1620, %v1624
      %v1629 = vmax.f32 %v1621, %v1623
      %v1630 = vmax.f32 %v1622, %v1624
      %v1631 = vrot.slane %v1501, 6
      %v1632 = vrot.slane %v1503, 6
      %v1635 = vmin.f32 %v1627, %v1631
      %v1636 = vmin.f32 %v1628, %v1632
      %v1637 = vmax.f32 %v1629, %v1631
      %v1638 = vmax.f32 %v1630, %v1632
      %v1639 = vmin.f32 %v1635, %v1507
      %v1640 = vmin.f32 %v1636, %v1509
      %v1641 = vmax.f32 %v1637, %v1507
      %v1642 = vmax.f32 %v1638, %v1509
      %v1645 = vrot.slane %v1639, 1
      %v1646 = vrot.slane %v1640, 1
      %v1649 = vrot.slane %v1639, 7
      %v1650 = vrot.slane %v1640, 7
      %v1655 = vrot.slane %v1641, 7
      %v1656 = vrot.slane %v1642, 7
      %v1659 = vrot.slane %v1641, 5
      %v1660 = vrot.slane %v1642, 5
      %vm1663 = vcmask 1040384
      %v1664 = vsel %vm1663, %v1645, %v1649
      %v1665 = vsel %vm1663, %v1646, %v1650
      %vm1666 = vcmask 1041408
      %v1667 = vsel %vm1666, %v1664, %v1655
      %v1668 = vsel %vm1666, %v1665, %v1656
      %vm1669 = vcmask 1042432
      %v1670 = vsel %vm1669, %v1667, %v1659
      %v1671 = vsel %vm1669, %v1668, %v1660
      %v1674 = vcombine.low %v1670, %v1671
      %1676 = vst [vmem:[%s534] sm:$0xff] %v1674
      %s1677 = smul.u32 2, %s29
      %p1678 = scmp.lt.s32.totalorder %s28, 1
      %s1679 = scalar_select %p1678, %s28, 1
      %p1680 = scmp.lt.s32.totalorder %s1677, 1
      %s1681 = scalar_select %p1680, %s1677, 1
      %s1682 = smul.addr %s1679, 2
      %s1683 = sadd.s32 %s1681, %s1682
      %s1684 = smul.addr %s1683, 8
      %s1685 = scalar_lea.vmem %s10, %s1684
      %s1686 = smul.u32 2, %s29
      %p1687 = scmp.lt.s32.totalorder %s28, 1
      %s1688 = scalar_select %p1687, %s28, 1
      %p1689 = scmp.lt.s32.totalorder %s1686, 1
      %s1690 = scalar_select %p1689, %s1686, 1
      %s1691 = smul.addr %s1688, 10
      %s1692 = sadd.s32 %s1690, %s1691
      %s1693 = smul.addr %s1692, 8
      %s1694 = scalar_lea.vmem %s11, %s1693
      %s1695 = smul.u32 2, %s29
      %p1696 = scmp.lt.s32.totalorder %s28, 1
      %s1697 = scalar_select %p1696, %s28, 1
      %p1698 = scmp.lt.s32.totalorder %s1695, 1
      %s1699 = scalar_select %p1698, %s1695, 1
      %s1700 = smul.addr %s1697, 2
      %s1701 = sadd.s32 %s1699, %s1700
      %s1702 = smul.addr %s1701, 4
      %s1703 = scalar_lea.vmem %s12, %s1702
      // Predicated region
      $region61: #{kpdet_forward.1} parent=59 // pred_check
        %p1704 = pneg %p280
      $region62: #{kpdet_forward.1} parent=59 // pred_check_branch
        %1706 = sbr.rel (%p1704) target = $region64
      $region63: #{kpdet_forward.1} parent=59 // pred_region
        %s1707 = smul.u32 2, %s29
      $region64: #{kpdet_forward.1} parent=59 // pred_fallthru
        _
      // Predicated region
      $region65: #{kpdet_forward.1} parent=59 // pred_check
        %p1708 = pneg %p308
      $region66: #{kpdet_forward.1} parent=59 // pred_check_branch
        %1710 = sbr.rel (%p1708) target = $region68
      $region67: #{kpdet_forward.1} parent=59 // pred_region
        %s1711 = smul.u32 2, %s29
      $region68: #{kpdet_forward.1} parent=59 // pred_fallthru
        _
      // Predicated region
      $region69: #{kpdet_forward.1} parent=59 // pred_check
        %p1712 = pneg %p336
      $region70: #{kpdet_forward.1} parent=59 // pred_check_branch
        %1714 = sbr.rel (%p1712) target = $region72
      $region71: #{kpdet_forward.1} parent=59 // pred_region
        %s1715 = smul.u32 2, %s29
      $region72: #{kpdet_forward.1} parent=59 // pred_fallthru
        _
    $region60: #{kpdet_forward.1} parent=5 // pred_fallthru
      _
    %p1716 = scmp.le.s32.totalorder 2, %s19
    // Predicated region
    $region73: #{kpdet_forward.1} parent=5 // pred_check
      %p1717 = pneg %p1716
    $region74: #{kpdet_forward.1} parent=5 // pred_check_branch
      %1719 = sbr.rel (%p1717) target = $region76
    $region75: #{kpdet_forward.1} parent=5 // pred_region
      %s1720 = ssub.s32 %s19, 2
      // Predicated region
      $region77: #{kpdet_forward.1} parent=75 // pred_check
        %p1721 = pneg %p286
      $region78: #{kpdet_forward.1} parent=75 // pred_check_branch
        %1723 = sbr.rel (%p1721) target = $region80
      $region79: #{kpdet_forward.1} parent=75 // pred_region
        %s1724 = smul.u32 2, %s31
        %p1725 = scmp.lt.s32.totalorder %s30, 1
        %s1726 = scalar_select %p1725, %s30, 1
        %p1727 = scmp.lt.s32.totalorder %s1724, 1
        %s1728 = scalar_select %p1727, %s1724, 1
        %s1729 = smul.addr %s1726, 2
        %s1730 = sadd.s32 %s1728, %s1729
        %s1731 = smul.addr %s1730, 8
        %s1732 = scalar_lea.vmem %s10, %s1731
      $region80: #{kpdet_forward.1} parent=75 // pred_fallthru
        _
      // Predicated region
      $region81: #{kpdet_forward.1} parent=75 // pred_check
        %p1733 = pneg %p314
      $region82: #{kpdet_forward.1} parent=75 // pred_check_branch
        %1735 = sbr.rel (%p1733) target = $region84
      $region83: #{kpdet_forward.1} parent=75 // pred_region
        %s1736 = smul.u32 2, %s31
        %p1737 = scmp.lt.s32.totalorder %s30, 1
        %s1738 = scalar_select %p1737, %s30, 1
        %p1739 = scmp.lt.s32.totalorder %s1736, 1
        %s1740 = scalar_select %p1739, %s1736, 1
        %s1741 = smul.addr %s1738, 10
        %s1742 = sadd.s32 %s1740, %s1741
        %s1743 = smul.addr %s1742, 8
        %s1744 = scalar_lea.vmem %s11, %s1743
      $region84: #{kpdet_forward.1} parent=75 // pred_fallthru
        _
      // Predicated region
      $region85: #{kpdet_forward.1} parent=75 // pred_check
        %p1745 = pneg %p342
      $region86: #{kpdet_forward.1} parent=75 // pred_check_branch
        %1747 = sbr.rel (%p1745) target = $region88
      $region87: #{kpdet_forward.1} parent=75 // pred_region
        %s1748 = smul.u32 2, %s31
        %p1749 = scmp.lt.s32.totalorder %s30, 1
        %s1750 = scalar_select %p1749, %s30, 1
        %p1751 = scmp.lt.s32.totalorder %s1748, 1
        %s1752 = scalar_select %p1751, %s1748, 1
        %s1753 = smul.addr %s1750, 2
        %s1754 = sadd.s32 %s1752, %s1753
        %s1755 = smul.addr %s1754, 4
        %s1756 = scalar_lea.vmem %s12, %s1755
      $region88: #{kpdet_forward.1} parent=75 // pred_fallthru
        _
    $region76: #{kpdet_forward.1} parent=5 // pred_fallthru
      _
  $region6: #{kpdet_forward.1} parent=0 // loop_footer
    %s23 = sadd.s32 1, %s19
  $region7: #{kpdet_forward.1} parent=0 // loop_footer_branch
    %18 = sbr.rel target = $region3
  $region8: #{kpdet_forward.1} parent=0 // loop_exit
    _

</llo_original>
